<compile_context>
chip_gen: v7x
topology: tpu7x:2x2x1
jax: 0.10.0
libtpu: 0.0.40
codegen_flags: <defaults>
</compile_context>

<pallas_src>
import math

import jax
import jax.numpy as jnp
import numpy as np
from jax.experimental import pallas as pl
from jax.experimental.pallas import tpu as pltpu

EPS = 1e-8  # utils.stable_angle eps


def _round_up(x, m):
    return ((x + m - 1) // m) * m


# ----------------------------- Pallas kernel --------------------------------
def _complex_convT_kernel(pr_ref, pi_ref, w_ref, mb_ref, pb_ref, m_ref, phi_ref):
    """Fused 3-stream matmul + complex epilogue on a transposed (K, tm) tile.

    pr, pi : (K_pad, tm)   bf16 im2col patches of x.real / x.imag (M on lanes)
    w      : (Cout, K_pad) bf16 flipped / transposed ConvTranspose2d weight
    mb, pb : (Cout, 1)     f32 magnitude / phase bias
    m, phi : (Cout, tm)    f32 outputs
    """
    pr = pr_ref[...]
    pi = pi_ref[...]
    w = w_ref[...]
    mb = mb_ref[...]
    pb = pb_ref[...]

    # |x| patches built in-kernel: the gather commutes with elementwise abs.
    # (Zero rows/cols from K/M padding and stride-dilation stay zero.)
    prf = pr.astype(jnp.float32)
    pif = pi.astype(jnp.float32)
    pa = jnp.sqrt(prf * prf + pif * pif).astype(pr.dtype)

    psi_re = jnp.dot(w, pr, preferred_element_type=jnp.float32)   # (Cout, tm)
    psi_im = jnp.dot(w, pi, preferred_element_type=jnp.float32)
    chi = jnp.dot(w, pa, preferred_element_type=jnp.float32) + mb

    m_psi = jnp.sqrt(psi_re * psi_re + psi_im * psi_im) + mb

    # stable_angle: clamp tiny imaginary parts to eps, then atan2.
    im_c = jnp.where(jnp.abs(psi_im) < EPS, EPS, psi_im)
    phi = jnp.arctan2(im_c, psi_re) + pb

    m_ref[...] = (0.5 * m_psi + 0.5 * chi).astype(m_ref.dtype)
    phi_ref[...] = phi.astype(phi_ref.dtype)


# ------------------------------- glue ----------------------------------------
def _dilate_pad(x, stride, kh, kw, padding, output_padding):
    """lhs-dilate by `stride`, edge-pad so a VALID conv with the flipped kernel
    equals ConvTranspose2d.  Negative edge pads (padding > k-1) crop."""
    cfg = [(0, 0, 0), (0, 0, 0),
           (kh - 1 - padding, kh - 1 - padding + output_padding, stride - 1),
           (kw - 1 - padding, kw - 1 - padding + output_padding, stride - 1)]
    return jax.lax.pad(x, jnp.zeros((), x.dtype), cfg)


def _im2col_t(x, kh, kw):
    """x: (N, C, H, W) -> transposed patches (C*kh*kw, N*Ho*Wo), stride-1 VALID."""
    N, C, H, W = x.shape
    Ho, Wo = H - kh + 1, W - kw + 1
    cols = []
    for dh in range(kh):
        for dw in range(kw):
            cols.append(x[:, :, dh:dh + Ho, dw:dw + Wo])
    p = jnp.stack(cols, axis=0).reshape(kh, kw, N, C, Ho, Wo)
    p = p.transpose(3, 0, 1, 2, 4, 5)            # (C, kh, kw, N, Ho, Wo)
    return p.reshape(C * kh * kw, N * Ho * Wo), Ho, Wo


def _pick_tm(M, K_pad, Cout, requested):
    """Largest lane tile that fits comfortably in VMEM (v7x: 64 MiB budget) while
    keeping >=2 grid steps when M allows (megacore sharding)."""
    def est(tm):
        return (2 * 2 * K_pad * tm * 2          # 2 bf16 patch streams, double-buffered
                + 2 * 2 * Cout * tm * 4         # 2 f32 outputs, double-buffered
                + 2 * Cout * K_pad * 2          # weight (double-buffered)
                + 2 * 2 * Cout * 4)             # biases
    tm = max(128, (requested // 128) * 128)
    tm = min(tm, max(128, _round_up((M + 1) // 2, 128)))   # >= 2 grid steps if possible
    budget = 48 * 1024 * 1024                   # headroom under v7x's 64 MiB VMEM
    while tm > 128 and est(tm) > budget:
        tm -= 128
    vmem_limit = 60 * 1024 * 1024 if est(tm) > 24 * 1024 * 1024 else None
    return tm, vmem_limit


def complex_conv_transpose2d(x_re, x_im, weight, magnitude_bias, phase_bias,
                             stride=1, padding=0, output_padding=0, tm=512):
    """Forward of ComplexConvTranspose2d.  Returns (m, phi), each (N, Cout, Ho, Wo).

    weight: (Cin, Cout, kh, kw)  -- PyTorch nn.ConvTranspose2d layout.
    """
    N, Cin, H, W = x_re.shape
    Cin_w, Cout, kh, kw = weight.shape
    assert Cin_w == Cin

    xr = _dilate_pad(x_re, stride, kh, kw, padding, output_padding)
    xi = _dilate_pad(x_im, stride, kh, kw, padding, output_padding)

    pr, Ho, Wo = _im2col_t(xr, kh, kw)           # (K, M)
    pi_, _, _ = _im2col_t(xi, kh, kw)
    K, M = pr.shape

    K_pad = _round_up(K, 8)                      # sublane dim of the patch tiles
    tm, vmem_limit = _pick_tm(M, K_pad, Cout, tm)
    M_pad = _round_up(M, tm)

    pr = jnp.pad(pr, ((0, K_pad - K), (0, M_pad - M))).astype(jnp.bfloat16)
    pi_ = jnp.pad(pi_, ((0, K_pad - K), (0, M_pad - M))).astype(jnp.bfloat16)

    # w2t[o, c*kh*kw + dh*kw + dw] = weight[c, o, kh-1-dh, kw-1-dw]
    w2t = jnp.flip(weight, axis=(2, 3)).transpose(1, 0, 2, 3).reshape(Cout, K)
    w2t = jnp.pad(w2t, ((0, 0), (0, K_pad - K))).astype(jnp.bfloat16)
    mb = magnitude_bias.reshape(Cout, 1).astype(jnp.float32)
    pb = phase_bias.reshape(Cout, 1).astype(jnp.float32)

    patch_spec = pl.BlockSpec((K_pad, tm), lambda i: (0, i))
    out_spec = pl.BlockSpec((Cout, tm), lambda i: (0, i))

    m_flat, phi_flat = pl.pallas_call(
        _complex_convT_kernel,
        out_shape=(jax.ShapeDtypeStruct((Cout, M_pad), jnp.float32),
                   jax.ShapeDtypeStruct((Cout, M_pad), jnp.float32)),
        grid_spec=pltpu.PrefetchScalarGridSpec(
            num_scalar_prefetch=0,
            grid=(M_pad // tm,),
            in_specs=[patch_spec, patch_spec,
                      pl.BlockSpec((Cout, K_pad), lambda i: (0, 0)),
                      pl.BlockSpec((Cout, 1), lambda i: (0, 0)),
                      pl.BlockSpec((Cout, 1), lambda i: (0, 0))],
            out_specs=[out_spec, out_spec]),
        compiler_params=pltpu.CompilerParams(
            dimension_semantics=("parallel",),
            vmem_limit_bytes=vmem_limit),
    )(pr, pi_, w2t, mb, pb)

    m = m_flat[:, :M].reshape(Cout, N, Ho, Wo).transpose(1, 0, 2, 3)
    phi = phi_flat[:, :M].reshape(Cout, N, Ho, Wo).transpose(1, 0, 2, 3)
    return m, phi


# ------------------------------- main -----------------------------------------
if __name__ == "__main__":
    key = jax.random.PRNGKey(0)
    k1, k2, k3, k4 = jax.random.split(key, 4)

    N, Cin, H, W = 2, 4, 16, 16
    Cout, ksz = 8, 3
    stride, padding, output_padding = 2, 1, 1

    # fan_in as in the module: out_channels * kh * kw (model_utils.get_conv_biases)
    fan_in = Cout * ksz * ksz
    bound = 1.0 / math.sqrt(fan_in)

    x_re = jax.random.normal(k1, (N, Cin, H, W), jnp.float32)
    x_im = jax.random.normal(k2, (N, Cin, H, W), jnp.float32)
    # nn.ConvTranspose2d weight layout: (in_channels, out_channels, kh, kw)
    weight = jax.random.uniform(k3, (Cin, Cout, ksz, ksz), jnp.float32, -bound, bound)
    magnitude_bias = jax.random.uniform(k4, (1, Cout, 1, 1), jnp.float32, -bound, bound)
    phase_bias = jnp.full((1, Cout, 1, 1), math.pi, jnp.float32)

    fwd = jax.jit(complex_conv_transpose2d,
                  static_argnames=("stride", "padding", "output_padding", "tm"))
    m, phi = fwd(x_re, x_im, weight, magnitude_bias, phase_bias,
                 stride=stride, padding=padding, output_padding=output_padding)
    jax.block_until_ready((m, phi))

    # ---- plain-JAX f32 reference (independent path: XLA dilated conv) --------
    def conv_t(z):
        w_eff = jnp.flip(weight, axis=(2, 3)).transpose(1, 0, 2, 3)  # (Cout,Cin,kh,kw)
        return jax.lax.conv_general_dilated(
            z, w_eff, window_strides=(1, 1),
            padding=((ksz - 1 - padding, ksz - 1 - padding + output_padding),
                     (ksz - 1 - padding, ksz - 1 - padding + output_padding)),
            lhs_dilation=(stride, stride),
            dimension_numbers=("NCHW", "OIHW", "NCHW"))

    psi_re = conv_t(x_re)
    psi_im = conv_t(x_im)
    chi_ref = conv_t(jnp.sqrt(x_re ** 2 + x_im ** 2)) + magnitude_bias
    m_psi_ref = jnp.sqrt(psi_re ** 2 + psi_im ** 2) + magnitude_bias
    im_c = jnp.where(jnp.abs(psi_im) < EPS, EPS, psi_im)
    phi_ref = jnp.arctan2(im_c, psi_re) + phase_bias
    m_ref = 0.5 * m_psi_ref + 0.5 * chi_ref

    Ho = (H - 1) * stride - 2 * padding + ksz + output_padding
    assert m.shape == m_ref.shape == (N, Cout, Ho, Ho)

    # m: bf16 matmul inputs -> modest tolerance against the f32 reference.
    np.testing.assert_allclose(np.asarray(m), np.asarray(m_ref), rtol=3e-2, atol=3e-2)

    # phi: compare modulo 2*pi (branch cuts), only where the angle is
    # well-conditioned (|psi| comfortably away from zero).
    mag = np.asarray(jnp.sqrt(psi_re ** 2 + psi_im ** 2))
    mask = mag > 0.3
    d = np.asarray(phi) - np.asarray(phi_ref)
    d = (d + np.pi) % (2.0 * np.pi) - np.pi
    np.testing.assert_allclose(np.where(mask, d, 0.0), 0.0, rtol=0, atol=5e-2)

    print("KERNEL_OK")
</pallas_src>

<mosaic_0001>
module attributes {stable_mosaic.version = 11 : i64} {
  func.func @_complex_convT_kernel(%arg0: i32, %arg1: memref<40x512xbf16, #tpu.memory_space<vmem>>, %arg2: memref<40x512xbf16, #tpu.memory_space<vmem>>, %arg3: memref<8x40xbf16, #tpu.memory_space<vmem>>, %arg4: memref<8x1xf32, #tpu.memory_space<vmem>>, %arg5: memref<8x1xf32, #tpu.memory_space<vmem>>, %arg6: memref<8x512xf32, #tpu.memory_space<vmem>>, %arg7: memref<8x512xf32, #tpu.memory_space<vmem>>) attributes {dimension_semantics = [#tpu.dimension_semantics<parallel>], iteration_bounds = array<i64: 4>, scalar_prefetch = 0 : i64, scratch_operands = 0 : i64, tpu.core_type = #tpu.core_type<tc>, window_params = [{transform_indices = @transform_0, window_bounds = array<i64: 40, 512>}, {transform_indices = @transform_1, window_bounds = array<i64: 40, 512>}, {pipeline_mode = #tpu.pipeline_mode<synchronous>, transform_indices = @transform_2, window_bounds = array<i64: 8, 40>}, {pipeline_mode = #tpu.pipeline_mode<synchronous>, transform_indices = @transform_3, window_bounds = array<i64: 8, 1>}, {pipeline_mode = #tpu.pipeline_mode<synchronous>, transform_indices = @transform_4, window_bounds = array<i64: 8, 1>}, {transform_indices = @transform_5, window_bounds = array<i64: 8, 512>}, {transform_indices = @transform_6, window_bounds = array<i64: 8, 512>}]} {
    %c0 = arith.constant 0 : index
    %c0_0 = arith.constant 0 : index
    %0 = vector.load %arg1[%c0, %c0_0] : memref<40x512xbf16, #tpu.memory_space<vmem>>, vector<40x512xbf16>
    %c0_1 = arith.constant 0 : index
    %c0_2 = arith.constant 0 : index
    %1 = vector.load %arg2[%c0_1, %c0_2] : memref<40x512xbf16, #tpu.memory_space<vmem>>, vector<40x512xbf16>
    %c0_3 = arith.constant 0 : index
    %c0_4 = arith.constant 0 : index
    %2 = vector.load %arg3[%c0_3, %c0_4] : memref<8x40xbf16, #tpu.memory_space<vmem>>, vector<8x40xbf16>
    %c0_5 = arith.constant 0 : index
    %c0_6 = arith.constant 0 : index
    %3 = vector.load %arg4[%c0_5, %c0_6] : memref<8x1xf32, #tpu.memory_space<vmem>>, vector<8x1xf32>
    %c0_7 = arith.constant 0 : index
    %c0_8 = arith.constant 0 : index
    %4 = vector.load %arg5[%c0_7, %c0_8] : memref<8x1xf32, #tpu.memory_space<vmem>>, vector<8x1xf32>
    %5 = arith.extf %0 : vector<40x512xbf16> to vector<40x512xf32>
    %6 = arith.extf %1 : vector<40x512xbf16> to vector<40x512xf32>
    %7 = arith.mulf %5, %5 : vector<40x512xf32>
    %8 = arith.mulf %6, %6 : vector<40x512xf32>
    %9 = arith.addf %7, %8 : vector<40x512xf32>
    %10 = math.sqrt %9 : vector<40x512xf32>
    %11 = arith.truncf %10 : vector<40x512xf32> to vector<40x512xbf16>
    %cst = arith.constant dense<0.000000e+00> : vector<8x512xf32>
    %12 = tpu.matmul %2, %0, %cst {dimension_numbers = #tpu.dot_dimension_numbers<[1], [0], [0], [1], [0, 0, 1, 1], [], []>} : vector<8x40xbf16>, vector<40x512xbf16>, vector<8x512xf32> -> vector<8x512xf32>
    %cst_9 = arith.constant dense<0.000000e+00> : vector<8x512xf32>
    %13 = tpu.matmul %2, %1, %cst_9 {dimension_numbers = #tpu.dot_dimension_numbers<[1], [0], [0], [1], [0, 0, 1, 1], [], []>} : vector<8x40xbf16>, vector<40x512xbf16>, vector<8x512xf32> -> vector<8x512xf32>
    %cst_10 = arith.constant dense<0.000000e+00> : vector<8x512xf32>
    %14 = tpu.matmul %2, %11, %cst_10 {dimension_numbers = #tpu.dot_dimension_numbers<[1], [0], [0], [1], [0, 0, 1, 1], [], []>} : vector<8x40xbf16>, vector<40x512xbf16>, vector<8x512xf32> -> vector<8x512xf32>
    %15 = vector.broadcast %3 : vector<8x1xf32> to vector<8x512xf32>
    %16 = arith.addf %14, %15 : vector<8x512xf32>
    %17 = arith.mulf %12, %12 : vector<8x512xf32>
    %18 = arith.mulf %13, %13 : vector<8x512xf32>
    %19 = arith.addf %17, %18 : vector<8x512xf32>
    %20 = math.sqrt %19 : vector<8x512xf32>
    %21 = vector.broadcast %3 : vector<8x1xf32> to vector<8x512xf32>
    %22 = arith.addf %20, %21 : vector<8x512xf32>
    %23 = math.absf %13 : vector<8x512xf32>
    %cst_11 = arith.constant 9.99999993E-9 : f32
    %24 = vector.broadcast %cst_11 : f32 to vector<8x512xf32>
    %25 = arith.cmpf olt, %23, %24 : vector<8x512xf32>
    %cst_12 = arith.constant 9.99999993E-9 : f32
    %26 = vector.broadcast %cst_12 : f32 to vector<8x512xf32>
    %27 = arith.select %25, %26, %13 : vector<8x512xi1>, vector<8x512xf32>
    %28 = math.atan2 %27, %12 : vector<8x512xf32>
    %29 = vector.broadcast %4 : vector<8x1xf32> to vector<8x512xf32>
    %30 = arith.addf %28, %29 : vector<8x512xf32>
    %cst_13 = arith.constant 5.000000e-01 : f32
    %31 = vector.broadcast %cst_13 : f32 to vector<8x512xf32>
    %32 = arith.mulf %31, %22 : vector<8x512xf32>
    %cst_14 = arith.constant 5.000000e-01 : f32
    %33 = vector.broadcast %cst_14 : f32 to vector<8x512xf32>
    %34 = arith.mulf %33, %16 : vector<8x512xf32>
    %35 = arith.addf %32, %34 : vector<8x512xf32>
    %c0_15 = arith.constant 0 : index
    %c0_16 = arith.constant 0 : index
    %36 = vector.load %arg6[%c0_15, %c0_16] : memref<8x512xf32, #tpu.memory_space<vmem>>, vector<8x512xf32>
    tpu.vector_store %arg6[%c0_15, %c0_16], %35 {strides = array<i32>} : memref<8x512xf32, #tpu.memory_space<vmem>>, vector<8x512xf32>,
    %c0_17 = arith.constant 0 : index
    %c0_18 = arith.constant 0 : index
    %37 = vector.load %arg7[%c0_17, %c0_18] : memref<8x512xf32, #tpu.memory_space<vmem>>, vector<8x512xf32>
    tpu.vector_store %arg7[%c0_17, %c0_18], %30 {strides = array<i32>} : memref<8x512xf32, #tpu.memory_space<vmem>>, vector<8x512xf32>,
    return
  }
  func.func @transform_0(%arg0: i32) -> (i32, i32) {
    %c0_i32 = arith.constant 0 : i32
    %c0_i32_0 = arith.constant 0 : i32
    return %c0_i32, %arg0 : i32, i32
  }
  func.func @transform_1(%arg0: i32) -> (i32, i32) {
    %c0_i32 = arith.constant 0 : i32
    %c0_i32_0 = arith.constant 0 : i32
    return %c0_i32, %arg0 : i32, i32
  }
  func.func @transform_2(%arg0: i32) -> (i32, i32) {
    %c0_i32 = arith.constant 0 : i32
    %c0_i32_0 = arith.constant 0 : i32
    %c0_i32_1 = arith.constant 0 : i32
    return %c0_i32, %c0_i32_0 : i32, i32
  }
  func.func @transform_3(%arg0: i32) -> (i32, i32) {
    %c0_i32 = arith.constant 0 : i32
    %c0_i32_0 = arith.constant 0 : i32
    %c0_i32_1 = arith.constant 0 : i32
    return %c0_i32, %c0_i32_0 : i32, i32
  }
  func.func @transform_4(%arg0: i32) -> (i32, i32) {
    %c0_i32 = arith.constant 0 : i32
    %c0_i32_0 = arith.constant 0 : i32
    %c0_i32_1 = arith.constant 0 : i32
    return %c0_i32, %c0_i32_0 : i32, i32
  }
  func.func @transform_5(%arg0: i32) -> (i32, i32) {
    %c0_i32 = arith.constant 0 : i32
    %c0_i32_0 = arith.constant 0 : i32
    return %c0_i32, %arg0 : i32, i32
  }
  func.func @transform_6(%arg0: i32) -> (i32, i32) {
    %c0_i32 = arith.constant 0 : i32
    %c0_i32_0 = arith.constant 0 : i32
    return %c0_i32, %arg0 : i32, i32
  }
}

</mosaic_0001>

<llo_original>
// kernel: complex_conv_transpose2d.1
$region0: #{complex_conv_transpose2d.1}
  #allocation0 [shape = 'u32[]', space=smem, size = 0x4, offset = 0x4, fixed_abs, tag = 'smem constant byte address 0x4 - core index']
  #allocation1 [shape = 'u32[144,128]{1,0:T(1,128)}', space=vmem, size = 0x12000, scoped, tag = 'internal scratch']
  %s0 = inlined_call_operand.vmem [shape: bf16[40,2048], index: 0, kind: input, shape index: {}]
  %s1 = inlined_call_operand.vmem [shape: bf16[40,2048], index: 1, kind: input, shape index: {}]
  %s2 = inlined_call_operand.vmem [shape: bf16[8,40], index: 2, kind: input, shape index: {}]
  %s3 = inlined_call_operand.vmem [shape: f32[8,1], index: 3, kind: input, shape index: {}]
  %s4 = inlined_call_operand.vmem [shape: f32[8,1], index: 4, kind: input, shape index: {}]
  %s5 = inlined_call_operand.vmem [shape: f32[8,2048], index: 5, kind: output, shape index: {0}]
  %s6 = inlined_call_operand.vmem [shape: f32[8,2048], index: 6, kind: output, shape index: {1}]
  %7 = xla_tuple %s5, %s6
  %s8 = sld [smem:[#allocation0]]
  $region107: #{complex_conv_transpose2d.1} parent=0
    _
  %s10 = ssub.s32 1, %s8
  %s11 = scalar_select 0, %s10, %s8
  $region1: #{complex_conv_transpose2d.1} parent=0
    #allocation2 [shape = 'u8[81920]{0}', space=vmem, size = 0x14000, scoped, tag = 'input window, operand 0']
    #allocation3 [shape = 'u8[81920]{0}', space=vmem, size = 0x14000, scoped, tag = 'input window, operand 1']
    loop: start=0, step=1, limit=6
    $region2: #{complex_conv_transpose2d.1} parent=1 // loop_pre_header
      _
    $region3: #{complex_conv_transpose2d.1} parent=1 // loop_header
      %s13 = sphi 0, %s17
      %p14 = scmp.ge.s32.totalorder %s13, 6
      %s23 = sphi 0, %s25
      %s26 = sphi 0, %s23
      %s27 = sphi 0, %s26
      %s43 = sphi 0, %s27
      %s49 = sphi 0, %s51
      %s52 = sphi 0, %s49
      %s53 = sphi 0, %s52
      %s69 = sphi 0, %s53
      %s73 = sphi 0, %s73
      %s75 = sphi 0, %s73
      %s76 = sphi 0, %s75
      %s90 = sphi 0, %s76
      %s94 = sphi 0, %s94
      %s96 = sphi 0, %s94
      %s97 = sphi 0, %s96
      %s111 = sphi 0, %s97
      %s115 = sphi 0, %s115
      %s117 = sphi 0, %s115
      %s118 = sphi 0, %s117
      %s132 = sphi 0, %s118
      %s138 = sphi 0, %s140
      %s141 = sphi 0, %s138
      %s142 = sphi 0, %s141
      %s158 = sphi 0, %s142
      %s164 = sphi 0, %s166
      %s167 = sphi 0, %s164
      %s168 = sphi 0, %s167
      %s184 = sphi 0, %s168
    $region4: #{complex_conv_transpose2d.1} parent=1 // loop_header_branch
      %16 = sbr.rel (%p14) target = $region8
    $region5: #{complex_conv_transpose2d.1} parent=1 // loop_body
      %s18 = ssub.s32 %s13, 1
      %s19 = ssub.s32 %s13, 2
      %s20 = sadd.s32 %s13, 1
      %s21 = ssub.s32 %s13, %s20
      %p22 = scmp.eq.s32.totalorder %s21, 0
      %s24 = sadd.s32 %s23, 1
      %s25 = scalar_select %p22, %s23, %s24
      %p28 = pneg %p22
      %p29 = scmp.eq.s32.totalorder %s13, 3
      %p30 = por %p28, %p29
      %p31 = scmp.ne.s32.totalorder %s23, %s26
      %p32 = scmp.eq.s32.totalorder %s13, 0
      %p33 = por %p31, %p32
      %p34 = scmp.ne.s32.totalorder %s23, %s26
      %p35 = scmp.eq.s32.totalorder %s18, 3
      %p36 = por %p34, %p35
      %p37 = scmp.ne.s32.totalorder %s26, %s27
      %p38 = scmp.eq.s32.totalorder %s18, 0
      %p39 = por %p37, %p38
      %p40 = scmp.ne.s32.totalorder %s26, %s27
      %p41 = scmp.eq.s32.totalorder %s19, 3
      %p42 = por %p40, %p41
      %p44 = scmp.ne.s32.totalorder %s27, %s43
      %p45 = scmp.eq.s32.totalorder %s19, 0
      %p46 = por %p44, %p45
      %s47 = ssub.s32 %s13, %s20
      %p48 = scmp.eq.s32.totalorder %s47, 0
      %s50 = sadd.s32 %s49, 1
      %s51 = scalar_select %p48, %s49, %s50
      %p54 = pneg %p48
      %p55 = scmp.eq.s32.totalorder %s13, 3
      %p56 = por %p54, %p55
      %p57 = scmp.ne.s32.totalorder %s49, %s52
      %p58 = scmp.eq.s32.totalorder %s13, 0
      %p59 = por %p57, %p58
      %p60 = scmp.ne.s32.totalorder %s49, %s52
      %p61 = scmp.eq.s32.totalorder %s18, 3
      %p62 = por %p60, %p61
      %p63 = scmp.ne.s32.totalorder %s52, %s53
      %p64 = scmp.eq.s32.totalorder %s18, 0
      %p65 = por %p63, %p64
      %p66 = scmp.ne.s32.totalorder %s52, %s53
      %p67 = scmp.eq.s32.totalorder %s19, 3
      %p68 = por %p66, %p67
      %p70 = scmp.ne.s32.totalorder %s53, %s69
      %p71 = scmp.eq.s32.totalorder %s19, 0
      %p72 = por %p70, %p71
      %s74 = sadd.s32 %s73, 1
      %p77 = scmp.eq.s32.totalorder %s13, 3
      %p78 = scmp.ne.s32.totalorder %s73, %s75
      %p79 = scmp.eq.s32.totalorder %s13, 0
      %p80 = por %p78, %p79
      %p81 = scmp.ne.s32.totalorder %s73, %s75
      %p82 = scmp.eq.s32.totalorder %s18, 3
      %p83 = por %p81, %p82
      %p84 = scmp.ne.s32.totalorder %s75, %s76
      %p85 = scmp.eq.s32.totalorder %s18, 0
      %p86 = por %p84, %p85
      %p87 = scmp.ne.s32.totalorder %s75, %s76
      %p88 = scmp.eq.s32.totalorder %s19, 3
      %p89 = por %p87, %p88
      %p91 = scmp.ne.s32.totalorder %s76, %s90
      %p92 = scmp.eq.s32.totalorder %s19, 0
      %p93 = por %p91, %p92
      %s95 = sadd.s32 %s94, 1
      %p98 = scmp.eq.s32.totalorder %s13, 3
      %p99 = scmp.ne.s32.totalorder %s94, %s96
      %p100 = scmp.eq.s32.totalorder %s13, 0
      %p101 = por %p99, %p100
      %p102 = scmp.ne.s32.totalorder %s94, %s96
      %p103 = scmp.eq.s32.totalorder %s18, 3
      %p104 = por %p102, %p103
      %p105 = scmp.ne.s32.totalorder %s96, %s97
      %p106 = scmp.eq.s32.totalorder %s18, 0
      %p107 = por %p105, %p106
      %p108 = scmp.ne.s32.totalorder %s96, %s97
      %p109 = scmp.eq.s32.totalorder %s19, 3
      %p110 = por %p108, %p109
      %p112 = scmp.ne.s32.totalorder %s97, %s111
      %p113 = scmp.eq.s32.totalorder %s19, 0
      %p114 = por %p112, %p113
      %s116 = sadd.s32 %s115, 1
      %p119 = scmp.eq.s32.totalorder %s13, 3
      %p120 = scmp.ne.s32.totalorder %s115, %s117
      %p121 = scmp.eq.s32.totalorder %s13, 0
      %p122 = por %p120, %p121
      %p123 = scmp.ne.s32.totalorder %s115, %s117
      %p124 = scmp.eq.s32.totalorder %s18, 3
      %p125 = por %p123, %p124
      %p126 = scmp.ne.s32.totalorder %s117, %s118
      %p127 = scmp.eq.s32.totalorder %s18, 0
      %p128 = por %p126, %p127
      %p129 = scmp.ne.s32.totalorder %s117, %s118
      %p130 = scmp.eq.s32.totalorder %s19, 3
      %p131 = por %p129, %p130
      %p133 = scmp.ne.s32.totalorder %s118, %s132
      %p134 = scmp.eq.s32.totalorder %s19, 0
      %p135 = por %p133, %p134
      %s136 = ssub.s32 %s13, %s20
      %p137 = scmp.eq.s32.totalorder %s136, 0
      %s139 = sadd.s32 %s138, 1
      %s140 = scalar_select %p137, %s138, %s139
      %p143 = pneg %p137
      %p144 = scmp.eq.s32.totalorder %s13, 3
      %p145 = por %p143, %p144
      %p146 = scmp.ne.s32.totalorder %s138, %s141
      %p147 = scmp.eq.s32.totalorder %s13, 0
      %p148 = por %p146, %p147
      %p149 = scmp.ne.s32.totalorder %s138, %s141
      %p150 = scmp.eq.s32.totalorder %s18, 3
      %p151 = por %p149, %p150
      %p152 = scmp.ne.s32.totalorder %s141, %s142
      %p153 = scmp.eq.s32.totalorder %s18, 0
      %p154 = por %p152, %p153
      %p155 = scmp.ne.s32.totalorder %s141, %s142
      %p156 = scmp.eq.s32.totalorder %s19, 3
      %p157 = por %p155, %p156
      %p159 = scmp.ne.s32.totalorder %s142, %s158
      %p160 = scmp.eq.s32.totalorder %s19, 0
      %p161 = por %p159, %p160
      %s162 = ssub.s32 %s13, %s20
      %p163 = scmp.eq.s32.totalorder %s162, 0
      %s165 = sadd.s32 %s164, 1
      %s166 = scalar_select %p163, %s164, %s165
      %p169 = pneg %p163
      %p170 = scmp.eq.s32.totalorder %s13, 3
      %p171 = por %p169, %p170
      %p172 = scmp.ne.s32.totalorder %s164, %s167
      %p173 = scmp.eq.s32.totalorder %s13, 0
      %p174 = por %p172, %p173
      %p175 = scmp.ne.s32.totalorder %s164, %s167
      %p176 = scmp.eq.s32.totalorder %s18, 3
      %p177 = por %p175, %p176
      %p178 = scmp.ne.s32.totalorder %s167, %s168
      %p179 = scmp.eq.s32.totalorder %s18, 0
      %p180 = por %p178, %p179
      %p181 = scmp.ne.s32.totalorder %s167, %s168
      %p182 = scmp.eq.s32.totalorder %s19, 3
      %p183 = por %p181, %p182
      %p185 = scmp.ne.s32.totalorder %s168, %s184
      %p186 = scmp.eq.s32.totalorder %s19, 0
      %p187 = por %p185, %p186
      %p188 = scmp.le.s32.totalorder 1, %s13
      %p189 = scmp.lt.s32.totalorder %s13, 5
      %p190 = pnand %p188, %p189
      %p191 = pneg %p190
      // Predicated region
      $region9: #{complex_conv_transpose2d.1} parent=5 // pred_check
        _
      $region10: #{complex_conv_transpose2d.1} parent=5 // pred_check_branch
        %193 = sbr.rel (%p190) target = $region12
      $region11: #{complex_conv_transpose2d.1} parent=5 // pred_region
        %s194 = ssub.s32 %s13, 1
        // Predicated region
        $region13: #{complex_conv_transpose2d.1} parent=11 // pred_check
          %p195 = pneg %p86
        $region14: #{complex_conv_transpose2d.1} parent=11 // pred_check_branch
          %197 = sbr.rel (%p195) target = $region16
        $region15: #{complex_conv_transpose2d.1} parent=11 // pred_region
          _
        $region16: #{complex_conv_transpose2d.1} parent=11 // pred_fallthru
          _
        // Predicated region
        $region17: #{complex_conv_transpose2d.1} parent=11 // pred_check
          %p198 = pneg %p107
        $region18: #{complex_conv_transpose2d.1} parent=11 // pred_check_branch
          %200 = sbr.rel (%p198) target = $region20
        $region19: #{complex_conv_transpose2d.1} parent=11 // pred_region
          _
        $region20: #{complex_conv_transpose2d.1} parent=11 // pred_fallthru
          _
        // Predicated region
        $region21: #{complex_conv_transpose2d.1} parent=11 // pred_check
          %p201 = pneg %p128
        $region22: #{complex_conv_transpose2d.1} parent=11 // pred_check_branch
          %203 = sbr.rel (%p201) target = $region24
        $region23: #{complex_conv_transpose2d.1} parent=11 // pred_region
          _
        $region24: #{complex_conv_transpose2d.1} parent=11 // pred_fallthru
          _
      $region12: #{complex_conv_transpose2d.1} parent=5 // pred_fallthru
        _
      %p204 = scmp.lt.s32.totalorder %s13, 4
      // Predicated region
      $region25: #{complex_conv_transpose2d.1} parent=5 // pred_check
        %p205 = pneg %p204
      $region26: #{complex_conv_transpose2d.1} parent=5 // pred_check_branch
        %207 = sbr.rel (%p205) target = $region28
      $region27: #{complex_conv_transpose2d.1} parent=5 // pred_region
        // Predicated region
        $region29: #{complex_conv_transpose2d.1} parent=27 // pred_check
          %p208 = pneg %p33
        $region30: #{complex_conv_transpose2d.1} parent=27 // pred_check_branch
          %210 = sbr.rel (%p208) target = $region32
        $region31: #{complex_conv_transpose2d.1} parent=27 // pred_region
          %s211 = sand.u32 %s23, 1
          %s212 = sand.u32 %s23, 1
          %s213 = smul.addr %s212, 80
          %s214 = scalar_lea.vmem [#allocation2], %s213
          %s215 = smul.u32 4, %s13
          %s216 = smul.addr %s215, 4
          %s217 = scalar_lea.vmem %s0, %s216
          // Predicated region
          $region33: #{complex_conv_transpose2d.1} parent=31 // pred_check
            _
          $region34: #{complex_conv_transpose2d.1} parent=31 // pred_check_branch
            %219 = sbr.rel (0) target = $region36
          $region35: #{complex_conv_transpose2d.1} parent=31 // pred_region
            // Predicated region
            $region37: #{complex_conv_transpose2d.1} parent=35 // pred_check
              _
            $region38: #{complex_conv_transpose2d.1} parent=35 // pred_check_branch
              %221 = sbr.rel (0) target = $region40
            $region39: #{complex_conv_transpose2d.1} parent=35 // pred_region
              loop: start=0, step=1, limit=1
              $region41: #{complex_conv_transpose2d.1} parent=39 // loop_pre_header
                _
              $region42: #{complex_conv_transpose2d.1} parent=39 // loop_header
                %s223 = sphi 0, %s227
                %p224 = scmp.ge.s32.totalorder %s223, 1
                %s228 = sphi %s217, %s217
                %s229 = sphi %s214, %s214
              $region43: #{complex_conv_transpose2d.1} parent=39 // loop_header_branch
                %226 = sbr.rel (%p224) target = $region47
              $region44: #{complex_conv_transpose2d.1} parent=39 // loop_body
                %v230 = vld [vmem:[%s228] sm:$0xff]
                %231 = vst [vmem:[%s229] sm:$0xff] %v230
                %v232 = vld [vmem:[%s228 + $0x8] sm:$0xff]
                %233 = vst [vmem:[%s229 + $0x8] sm:$0xff] %v232
                %v234 = vld [vmem:[%s228 + $0x40] sm:$0xff]
                %235 = vst [vmem:[%s229 + $0x10] sm:$0xff] %v234
                %v236 = vld [vmem:[%s228 + $0x48] sm:$0xff]
                %237 = vst [vmem:[%s229 + $0x18] sm:$0xff] %v236
                %v238 = vld [vmem:[%s228 + $0x80] sm:$0xff]
                %239 = vst [vmem:[%s229 + $0x20] sm:$0xff] %v238
                %v240 = vld [vmem:[%s228 + $0x88] sm:$0xff]
                %241 = vst [vmem:[%s229 + $0x28] sm:$0xff] %v240
                %v242 = vld [vmem:[%s228 + $0xc0] sm:$0xff]
                %243 = vst [vmem:[%s229 + $0x30] sm:$0xff] %v242
                %v244 = vld [vmem:[%s228 + $0xc8] sm:$0xff]
                %245 = vst [vmem:[%s229 + $0x38] sm:$0xff] %v244
                %v246 = vld [vmem:[%s228 + $0x100] sm:$0xff]
                %247 = vst [vmem:[%s229 + $0x40] sm:$0xff] %v246
                %v248 = vld [vmem:[%s228 + $0x108] sm:$0xff]
                %249 = vst [vmem:[%s229 + $0x48] sm:$0xff] %v248
              $region45: #{complex_conv_transpose2d.1} parent=39 // loop_footer
                %s227 = sadd.s32 1, %s223
              $region46: #{complex_conv_transpose2d.1} parent=39 // loop_footer_branch
                %222 = sbr.rel target = $region42
              $region47: #{complex_conv_transpose2d.1} parent=39 // loop_exit
                _
            $region40: #{complex_conv_transpose2d.1} parent=35 // pred_fallthru
              _
            // Predicated region
            $region48: #{complex_conv_transpose2d.1} parent=35 // pred_check
              _
            $region49: #{complex_conv_transpose2d.1} parent=35 // pred_check_branch
              %251 = sbr.rel target = $region51
            $region50: #{complex_conv_transpose2d.1} parent=35 // pred_region
              _
            $region51: #{complex_conv_transpose2d.1} parent=35 // pred_fallthru
              _
          $region36: #{complex_conv_transpose2d.1} parent=31 // pred_fallthru
            _
          %252 = vnop
        $region32: #{complex_conv_transpose2d.1} parent=27 // pred_fallthru
          _
        // Predicated region
        $region52: #{complex_conv_transpose2d.1} parent=27 // pred_check
          %p253 = pneg %p59
        $region53: #{complex_conv_transpose2d.1} parent=27 // pred_check_branch
          %255 = sbr.rel (%p253) target = $region55
        $region54: #{complex_conv_transpose2d.1} parent=27 // pred_region
          %s256 = sand.u32 %s49, 1
          %s257 = sand.u32 %s49, 1
          %s258 = smul.addr %s257, 80
          %s259 = scalar_lea.vmem [#allocation3], %s258
          %s260 = smul.u32 4, %s13
          %s261 = smul.addr %s260, 4
          %s262 = scalar_lea.vmem %s1, %s261
          // Predicated region
          $region56: #{complex_conv_transpose2d.1} parent=54 // pred_check
            _
          $region57: #{complex_conv_transpose2d.1} parent=54 // pred_check_branch
            %264 = sbr.rel (0) target = $region59
          $region58: #{complex_conv_transpose2d.1} parent=54 // pred_region
            // Predicated region
            $region60: #{complex_conv_transpose2d.1} parent=58 // pred_check
              _
            $region61: #{complex_conv_transpose2d.1} parent=58 // pred_check_branch
              %266 = sbr.rel (0) target = $region63
            $region62: #{complex_conv_transpose2d.1} parent=58 // pred_region
              loop: start=0, step=1, limit=1
              $region64: #{complex_conv_transpose2d.1} parent=62 // loop_pre_header
                _
              $region65: #{complex_conv_transpose2d.1} parent=62 // loop_header
                %s268 = sphi 0, %s272
                %p269 = scmp.ge.s32.totalorder %s268, 1
                %s273 = sphi %s262, %s262
                %s274 = sphi %s259, %s259
              $region66: #{complex_conv_transpose2d.1} parent=62 // loop_header_branch
                %271 = sbr.rel (%p269) target = $region70
              $region67: #{complex_conv_transpose2d.1} parent=62 // loop_body
                %v275 = vld [vmem:[%s273] sm:$0xff]
                %276 = vst [vmem:[%s274] sm:$0xff] %v275
                %v277 = vld [vmem:[%s273 + $0x8] sm:$0xff]
                %278 = vst [vmem:[%s274 + $0x8] sm:$0xff] %v277
                %v279 = vld [vmem:[%s273 + $0x40] sm:$0xff]
                %280 = vst [vmem:[%s274 + $0x10] sm:$0xff] %v279
                %v281 = vld [vmem:[%s273 + $0x48] sm:$0xff]
                %282 = vst [vmem:[%s274 + $0x18] sm:$0xff] %v281
                %v283 = vld [vmem:[%s273 + $0x80] sm:$0xff]
                %284 = vst [vmem:[%s274 + $0x20] sm:$0xff] %v283
                %v285 = vld [vmem:[%s273 + $0x88] sm:$0xff]
                %286 = vst [vmem:[%s274 + $0x28] sm:$0xff] %v285
                %v287 = vld [vmem:[%s273 + $0xc0] sm:$0xff]
                %288 = vst [vmem:[%s274 + $0x30] sm:$0xff] %v287
                %v289 = vld [vmem:[%s273 + $0xc8] sm:$0xff]
                %290 = vst [vmem:[%s274 + $0x38] sm:$0xff] %v289
                %v291 = vld [vmem:[%s273 + $0x100] sm:$0xff]
                %292 = vst [vmem:[%s274 + $0x40] sm:$0xff] %v291
                %v293 = vld [vmem:[%s273 + $0x108] sm:$0xff]
                %294 = vst [vmem:[%s274 + $0x48] sm:$0xff] %v293
              $region68: #{complex_conv_transpose2d.1} parent=62 // loop_footer
                %s272 = sadd.s32 1, %s268
              $region69: #{complex_conv_transpose2d.1} parent=62 // loop_footer_branch
                %267 = sbr.rel target = $region65
              $region70: #{complex_conv_transpose2d.1} parent=62 // loop_exit
                _
            $region63: #{complex_conv_transpose2d.1} parent=58 // pred_fallthru
              _
            // Predicated region
            $region71: #{complex_conv_transpose2d.1} parent=58 // pred_check
              _
            $region72: #{complex_conv_transpose2d.1} parent=58 // pred_check_branch
              %296 = sbr.rel target = $region74
            $region73: #{complex_conv_transpose2d.1} parent=58 // pred_region
              _
            $region74: #{complex_conv_transpose2d.1} parent=58 // pred_fallthru
              _
          $region59: #{complex_conv_transpose2d.1} parent=54 // pred_fallthru
            _
          %297 = vnop
        $region55: #{complex_conv_transpose2d.1} parent=27 // pred_fallthru
          _
      $region28: #{complex_conv_transpose2d.1} parent=5 // pred_fallthru
        _
      %p298 = scmp.le.s32.totalorder 1, %s13
      %p299 = scmp.lt.s32.totalorder %s13, 5
      %p300 = pnand %p298, %p299
      %p301 = pneg %p300
      // Predicated region
      $region75: #{complex_conv_transpose2d.1} parent=5 // pred_check
        _
      $region76: #{complex_conv_transpose2d.1} parent=5 // pred_check_branch
        %303 = sbr.rel (%p300) target = $region78
      $region77: #{complex_conv_transpose2d.1} parent=5 // pred_region
        %s304 = ssub.s32 %s13, 1
        %s305 = sand.u32 %s26, 1
        %s306 = sand.u32 %s26, 1
        %s307 = smul.addr %s306, 80
        %s308 = scalar_lea.vmem [#allocation2], %s307
        // Predicated region
        $region79: #{complex_conv_transpose2d.1} parent=77 // pred_check
          %p309 = pneg %p39
        $region80: #{complex_conv_transpose2d.1} parent=77 // pred_check_branch
          %311 = sbr.rel (%p309) target = $region82
        $region81: #{complex_conv_transpose2d.1} parent=77 // pred_region
          _
        $region82: #{complex_conv_transpose2d.1} parent=77 // pred_fallthru
          _
        %s312 = sand.u32 %s52, 1
        %s313 = sand.u32 %s52, 1
        %s314 = smul.addr %s313, 80
        %s315 = scalar_lea.vmem [#allocation3], %s314
        // Predicated region
        $region83: #{complex_conv_transpose2d.1} parent=77 // pred_check
          %p316 = pneg %p65
        $region84: #{complex_conv_transpose2d.1} parent=77 // pred_check_branch
          %318 = sbr.rel (%p316) target = $region86
        $region85: #{complex_conv_transpose2d.1} parent=77 // pred_region
          _
        $region86: #{complex_conv_transpose2d.1} parent=77 // pred_fallthru
          _
        %s319 = sand.u32 %s26, 1
        %s320 = sand.u32 %s26, 1
        %s321 = smul.addr %s320, 80
        %s322 = scalar_lea.vmem [#allocation2], %s321
        %p323 = pneg %p39
        %p324 = pneg %p36
        %s325 = sand.u32 %s52, 1
        %s326 = sand.u32 %s52, 1
        %s327 = smul.addr %s326, 80
        %s328 = scalar_lea.vmem [#allocation3], %s327
        %p329 = pneg %p65
        %p330 = pneg %p62
        %p331 = pneg %p86
        %p332 = pneg %p83
        %p333 = pneg %p107
        %p334 = pneg %p104
        %p335 = pneg %p128
        %p336 = pneg %p125
        %p337 = pneg %p154
        %p338 = pneg %p151
        %s339 = smul.u32 4, %s18
        %p340 = scmp.lt.s32.totalorder %s339, 15
        %s341 = scalar_select %p340, %s339, 15
        %s342 = smul.addr %s341, 8
        %s343 = scalar_lea.vmem %s5, %s342
        %p344 = pneg %p180
        %p345 = pneg %p177
        %s346 = smul.u32 4, %s18
        %p347 = scmp.lt.s32.totalorder %s346, 15
        %s348 = scalar_select %p347, %s346, 15
        %s349 = smul.addr %s348, 8
        %s350 = scalar_lea.vmem %s6, %s349
        %s351 = smul.u32 4, %s18
        %s352 = smul.u32 4, %s18
        %s353 = smul.u32 4, %s18
        %p354 = scmp.lt.s32.totalorder %s353, 15
        %s355 = scalar_select %p354, %s353, 15
        %s356 = smul.addr %s355, 8
        %s357 = scalar_lea.vmem %s5, %s356
        %s358 = smul.u32 4, %s18
        %s359 = smul.u32 4, %s18
        %p360 = scmp.lt.s32.totalorder %s359, 15
        %s361 = scalar_select %p360, %s359, 15
        %s362 = smul.addr %s361, 8
        %s363 = scalar_lea.vmem %s6, %s362
        %s364 = smul.u32 4, %s18
        %v366 = vld [vmem:[%s308] sm:$0xff]
        %v367 = vld [vmem:[%s308 + $0x8] sm:$0xff]
        %v368 = vld [vmem:[%s308 + $0x10] sm:$0xff]
        %v369 = vld [vmem:[%s308 + $0x18] sm:$0xff]
        %v370 = vld [vmem:[%s308 + $0x20] sm:$0xff]
        %v371 = vld [vmem:[%s308 + $0x28] sm:$0xff]
        %v372 = vld [vmem:[%s308 + $0x30] sm:$0xff]
        %v373 = vld [vmem:[%s308 + $0x38] sm:$0xff]
        %v374 = vld [vmem:[%s308 + $0x40] sm:$0xff]
        %v375 = vld [vmem:[%s308 + $0x48] sm:$0xff]
        %v376 = vld [vmem:[%s315] sm:$0xff]
        %v377 = vld [vmem:[%s315 + $0x8] sm:$0xff]
        %v378 = vld [vmem:[%s315 + $0x10] sm:$0xff]
        %v379 = vld [vmem:[%s315 + $0x18] sm:$0xff]
        %v380 = vld [vmem:[%s315 + $0x20] sm:$0xff]
        %v381 = vld [vmem:[%s315 + $0x28] sm:$0xff]
        %v382 = vld [vmem:[%s315 + $0x30] sm:$0xff]
        %v383 = vld [vmem:[%s315 + $0x38] sm:$0xff]
        %v384 = vld [vmem:[%s315 + $0x40] sm:$0xff]
        %v385 = vld [vmem:[%s315 + $0x48] sm:$0xff]
        %v386 = vld [vmem:[%s2] sm:$0xf]
        %v387 = vld [vmem:[%s3] sm:$0xff]
        %v388 = vld [vmem:[%s4] sm:$0xff]
        %v389 = vunpack.c.l.bf16 %v366
        %v390 = vunpack.c.h.bf16 %v366
        %v391 = vunpack.c.l.bf16 %v367
        %v392 = vunpack.c.h.bf16 %v367
        %v393 = vunpack.c.l.bf16 %v368
        %v394 = vunpack.c.h.bf16 %v368
        %v395 = vunpack.c.l.bf16 %v369
        %v396 = vunpack.c.h.bf16 %v369
        %v397 = vunpack.c.l.bf16 %v370
        %v398 = vunpack.c.h.bf16 %v370
        %v399 = vunpack.c.l.bf16 %v371
        %v400 = vunpack.c.h.bf16 %v371
        %v401 = vunpack.c.l.bf16 %v372
        %v402 = vunpack.c.h.bf16 %v372
        %v403 = vunpack.c.l.bf16 %v373
        %v404 = vunpack.c.h.bf16 %v373
        %v405 = vunpack.c.l.bf16 %v374
        %v406 = vunpack.c.h.bf16 %v374
        %v407 = vunpack.c.l.bf16 %v375
        %v408 = vunpack.c.h.bf16 %v375
        %v409 = vunpack.c.l.bf16 %v376
        %v410 = vunpack.c.h.bf16 %v376
        %v411 = vunpack.c.l.bf16 %v377
        %v412 = vunpack.c.h.bf16 %v377
        %v413 = vunpack.c.l.bf16 %v378
        %v414 = vunpack.c.h.bf16 %v378
        %v415 = vunpack.c.l.bf16 %v379
        %v416 = vunpack.c.h.bf16 %v379
        %v417 = vunpack.c.l.bf16 %v380
        %v418 = vunpack.c.h.bf16 %v380
        %v419 = vunpack.c.l.bf16 %v381
        %v420 = vunpack.c.h.bf16 %v381
        %v421 = vunpack.c.l.bf16 %v382
        %v422 = vunpack.c.h.bf16 %v382
        %v423 = vunpack.c.l.bf16 %v383
        %v424 = vunpack.c.h.bf16 %v383
        %v425 = vunpack.c.l.bf16 %v384
        %v426 = vunpack.c.h.bf16 %v384
        %v427 = vunpack.c.l.bf16 %v385
        %v428 = vunpack.c.h.bf16 %v385
        %v429 = vmul.f32 %v389, %v389
        %v430 = vmul.f32 %v390, %v390
        %v431 = vmul.f32 %v391, %v391
        %v432 = vmul.f32 %v392, %v392
        %v433 = vmul.f32 %v393, %v393
        %v434 = vmul.f32 %v394, %v394
        %v435 = vmul.f32 %v395, %v395
        %v436 = vmul.f32 %v396, %v396
        %v437 = vmul.f32 %v397, %v397
        %v438 = vmul.f32 %v398, %v398
        %v439 = vmul.f32 %v399, %v399
        %v440 = vmul.f32 %v400, %v400
        %v441 = vmul.f32 %v401, %v401
        %v442 = vmul.f32 %v402, %v402
        %v443 = vmul.f32 %v403, %v403
        %v444 = vmul.f32 %v404, %v404
        %v445 = vmul.f32 %v405, %v405
        %v446 = vmul.f32 %v406, %v406
        %v447 = vmul.f32 %v407, %v407
        %v448 = vmul.f32 %v408, %v408
        %v449 = vmul.f32 %v409, %v409
        %v450 = vmul.f32 %v410, %v410
        %v451 = vmul.f32 %v411, %v411
        %v452 = vmul.f32 %v412, %v412
        %v453 = vmul.f32 %v413, %v413
        %v454 = vmul.f32 %v414, %v414
        %v455 = vmul.f32 %v415, %v415
        %v456 = vmul.f32 %v416, %v416
        %v457 = vmul.f32 %v417, %v417
        %v458 = vmul.f32 %v418, %v418
        %v459 = vmul.f32 %v419, %v419
        %v460 = vmul.f32 %v420, %v420
        %v461 = vmul.f32 %v421, %v421
        %v462 = vmul.f32 %v422, %v422
        %v463 = vmul.f32 %v423, %v423
        %v464 = vmul.f32 %v424, %v424
        %v465 = vmul.f32 %v425, %v425
        %v466 = vmul.f32 %v426, %v426
        %v467 = vmul.f32 %v427, %v427
        %v468 = vmul.f32 %v428, %v428
        %v469 = vadd.f32 %v429, %v449
        %v470 = vadd.f32 %v430, %v450
        %v471 = vadd.f32 %v431, %v451
        %v472 = vadd.f32 %v432, %v452
        %v473 = vadd.f32 %v433, %v453
        %v474 = vadd.f32 %v434, %v454
        %v475 = vadd.f32 %v435, %v455
        %v476 = vadd.f32 %v436, %v456
        %v477 = vadd.f32 %v437, %v457
        %v478 = vadd.f32 %v438, %v458
        %v479 = vadd.f32 %v439, %v459
        %v480 = vadd.f32 %v440, %v460
        %v481 = vadd.f32 %v441, %v461
        %v482 = vadd.f32 %v442, %v462
        %v483 = vadd.f32 %v443, %v463
        %v484 = vadd.f32 %v444, %v464
        %v485 = vadd.f32 %v445, %v465
        %v486 = vadd.f32 %v446, %v466
        %v487 = vadd.f32 %v447, %v467
        %v488 = vadd.f32 %v448, %v468
        %v489 = vrsqrt.pop %v469
        %v490 = vmul.f32 %v469, %v489
        %vm491 = vcmp.eq.f32.partialorder %v469, inf
        %v492 = vsel %vm491, %v469, %v490
        %vm493 = vcmp.eq.f32.partialorder %v469, 0.0
        %v494 = vand.u32 %v469, 2147483648
        %v495 = vsel %vm493, %v494, %v492
        %v496 = vrsqrt.pop %v470
        %v497 = vmul.f32 %v470, %v496
        %vm498 = vcmp.eq.f32.partialorder %v470, inf
        %v499 = vsel %vm498, %v470, %v497
        %vm500 = vcmp.eq.f32.partialorder %v470, 0.0
        %v501 = vand.u32 %v470, 2147483648
        %v502 = vsel %vm500, %v501, %v499
        %v503 = vrsqrt.pop %v471
        %v504 = vmul.f32 %v471, %v503
        %vm505 = vcmp.eq.f32.partialorder %v471, inf
        %v506 = vsel %vm505, %v471, %v504
        %vm507 = vcmp.eq.f32.partialorder %v471, 0.0
        %v508 = vand.u32 %v471, 2147483648
        %v509 = vsel %vm507, %v508, %v506
        %v510 = vrsqrt.pop %v472
        %v511 = vmul.f32 %v472, %v510
        %vm512 = vcmp.eq.f32.partialorder %v472, inf
        %v513 = vsel %vm512, %v472, %v511
        %vm514 = vcmp.eq.f32.partialorder %v472, 0.0
        %v515 = vand.u32 %v472, 2147483648
        %v516 = vsel %vm514, %v515, %v513
        %v517 = vrsqrt.pop %v473
        %v518 = vmul.f32 %v473, %v517
        %vm519 = vcmp.eq.f32.partialorder %v473, inf
        %v520 = vsel %vm519, %v473, %v518
        %vm521 = vcmp.eq.f32.partialorder %v473, 0.0
        %v522 = vand.u32 %v473, 2147483648
        %v523 = vsel %vm521, %v522, %v520
        %v524 = vrsqrt.pop %v474
        %v525 = vmul.f32 %v474, %v524
        %vm526 = vcmp.eq.f32.partialorder %v474, inf
        %v527 = vsel %vm526, %v474, %v525
        %vm528 = vcmp.eq.f32.partialorder %v474, 0.0
        %v529 = vand.u32 %v474, 2147483648
        %v530 = vsel %vm528, %v529, %v527
        %v531 = vrsqrt.pop %v475
        %v532 = vmul.f32 %v475, %v531
        %vm533 = vcmp.eq.f32.partialorder %v475, inf
        %v534 = vsel %vm533, %v475, %v532
        %vm535 = vcmp.eq.f32.partialorder %v475, 0.0
        %v536 = vand.u32 %v475, 2147483648
        %v537 = vsel %vm535, %v536, %v534
        %v538 = vrsqrt.pop %v476
        %v539 = vmul.f32 %v476, %v538
        %vm540 = vcmp.eq.f32.partialorder %v476, inf
        %v541 = vsel %vm540, %v476, %v539
        %vm542 = vcmp.eq.f32.partialorder %v476, 0.0
        %v543 = vand.u32 %v476, 2147483648
        %v544 = vsel %vm542, %v543, %v541
        %v545 = vrsqrt.pop %v477
        %v546 = vmul.f32 %v477, %v545
        %vm547 = vcmp.eq.f32.partialorder %v477, inf
        %v548 = vsel %vm547, %v477, %v546
        %vm549 = vcmp.eq.f32.partialorder %v477, 0.0
        %v550 = vand.u32 %v477, 2147483648
        %v551 = vsel %vm549, %v550, %v548
        %v552 = vrsqrt.pop %v478
        %v553 = vmul.f32 %v478, %v552
        %vm554 = vcmp.eq.f32.partialorder %v478, inf
        %v555 = vsel %vm554, %v478, %v553
        %vm556 = vcmp.eq.f32.partialorder %v478, 0.0
        %v557 = vand.u32 %v478, 2147483648
        %v558 = vsel %vm556, %v557, %v555
        %v559 = vrsqrt.pop %v479
        %v560 = vmul.f32 %v479, %v559
        %vm561 = vcmp.eq.f32.partialorder %v479, inf
        %v562 = vsel %vm561, %v479, %v560
        %vm563 = vcmp.eq.f32.partialorder %v479, 0.0
        %v564 = vand.u32 %v479, 2147483648
        %v565 = vsel %vm563, %v564, %v562
        %v566 = vrsqrt.pop %v480
        %v567 = vmul.f32 %v480, %v566
        %vm568 = vcmp.eq.f32.partialorder %v480, inf
        %v569 = vsel %vm568, %v480, %v567
        %vm570 = vcmp.eq.f32.partialorder %v480, 0.0
        %v571 = vand.u32 %v480, 2147483648
        %v572 = vsel %vm570, %v571, %v569
        %v573 = vrsqrt.pop %v481
        %v574 = vmul.f32 %v481, %v573
        %vm575 = vcmp.eq.f32.partialorder %v481, inf
        %v576 = vsel %vm575, %v481, %v574
        %vm577 = vcmp.eq.f32.partialorder %v481, 0.0
        %v578 = vand.u32 %v481, 2147483648
        %v579 = vsel %vm577, %v578, %v576
        %v580 = vrsqrt.pop %v482
        %v581 = vmul.f32 %v482, %v580
        %vm582 = vcmp.eq.f32.partialorder %v482, inf
        %v583 = vsel %vm582, %v482, %v581
        %vm584 = vcmp.eq.f32.partialorder %v482, 0.0
        %v585 = vand.u32 %v482, 2147483648
        %v586 = vsel %vm584, %v585, %v583
        %v587 = vrsqrt.pop %v483
        %v588 = vmul.f32 %v483, %v587
        %vm589 = vcmp.eq.f32.partialorder %v483, inf
        %v590 = vsel %vm589, %v483, %v588
        %vm591 = vcmp.eq.f32.partialorder %v483, 0.0
        %v592 = vand.u32 %v483, 2147483648
        %v593 = vsel %vm591, %v592, %v590
        %v594 = vrsqrt.pop %v484
        %v595 = vmul.f32 %v484, %v594
        %vm596 = vcmp.eq.f32.partialorder %v484, inf
        %v597 = vsel %vm596, %v484, %v595
        %vm598 = vcmp.eq.f32.partialorder %v484, 0.0
        %v599 = vand.u32 %v484, 2147483648
        %v600 = vsel %vm598, %v599, %v597
        %v601 = vrsqrt.pop %v485
        %v602 = vmul.f32 %v485, %v601
        %vm603 = vcmp.eq.f32.partialorder %v485, inf
        %v604 = vsel %vm603, %v485, %v602
        %vm605 = vcmp.eq.f32.partialorder %v485, 0.0
        %v606 = vand.u32 %v485, 2147483648
        %v607 = vsel %vm605, %v606, %v604
        %v608 = vrsqrt.pop %v486
        %v609 = vmul.f32 %v486, %v608
        %vm610 = vcmp.eq.f32.partialorder %v486, inf
        %v611 = vsel %vm610, %v486, %v609
        %vm612 = vcmp.eq.f32.partialorder %v486, 0.0
        %v613 = vand.u32 %v486, 2147483648
        %v614 = vsel %vm612, %v613, %v611
        %v615 = vrsqrt.pop %v487
        %v616 = vmul.f32 %v487, %v615
        %vm617 = vcmp.eq.f32.partialorder %v487, inf
        %v618 = vsel %vm617, %v487, %v616
        %vm619 = vcmp.eq.f32.partialorder %v487, 0.0
        %v620 = vand.u32 %v487, 2147483648
        %v621 = vsel %vm619, %v620, %v618
        %v622 = vrsqrt.pop %v488
        %v623 = vmul.f32 %v488, %v622
        %vm624 = vcmp.eq.f32.partialorder %v488, inf
        %v625 = vsel %vm624, %v488, %v623
        %vm626 = vcmp.eq.f32.partialorder %v488, 0.0
        %v627 = vand.u32 %v488, 2147483648
        %v628 = vsel %vm626, %v627, %v625
        %v629 = vpack.c.bf16 %v523, %v495
        %v630 = vpack.c.bf16 %v530, %v502
        %v631 = vpack.c.bf16 %v537, %v509
        %v632 = vpack.c.bf16 %v544, %v516
        %v633 = vpack.c.bf16 %v579, %v551
        %v634 = vpack.c.bf16 %v586, %v558
        %v635 = vpack.c.bf16 %v593, %v565
        %v636 = vpack.c.bf16 %v600, %v572
        %v637 = vpack.c.bf16 %v607, %v607
        %v638 = vpack.c.bf16 %v614, %v614
        %v639 = vpack.c.bf16 %v621, %v621
        %v640 = vpack.c.bf16 %v628, %v628
        %v651 = vunpack.c.l.b16 %v366
        %v652 = vunpack.c.h.b16 %v366
        %v653 = vunpack.c.l.b16 %v367
        %v654 = vunpack.c.h.b16 %v367
        %v655 = vunpack.c.l.b16 %v368
        %v656 = vunpack.c.h.b16 %v368
        %v657 = vunpack.c.l.b16 %v369
        %v658 = vunpack.c.h.b16 %v369
        %v659 = vunpack.c.l.b16 %v370
        %v660 = vunpack.c.h.b16 %v370
        %v661 = vunpack.c.l.b16 %v371
        %v662 = vunpack.c.h.b16 %v371
        %v663 = vunpack.c.l.b16 %v372
        %v664 = vunpack.c.h.b16 %v372
        %v665 = vunpack.c.l.b16 %v373
        %v666 = vunpack.c.h.b16 %v373
        %v667 = vunpack.c.l.b16 %v374
        %v668 = vunpack.c.h.b16 %v374
        %v669 = vunpack.c.l.b16 %v375
        %v670 = vunpack.c.h.b16 %v375
        %v671 = vpack.c.b16 %v655, %v651
        %v672 = vpack.c.b16 %v656, %v652
        %v673 = vpack.c.b16 %v657, %v653
        %v674 = vpack.c.b16 %v658, %v654
        %v675 = vpack.c.b16 %v663, %v659
        %v676 = vpack.c.b16 %v664, %v660
        %v677 = vpack.c.b16 %v665, %v661
        %v678 = vpack.c.b16 %v666, %v662
        %v679 = vpack.c.b16 %v667, %v667
        %v680 = vpack.c.b16 %v668, %v668
        %v681 = vpack.c.b16 %v669, %v669
        %v682 = vpack.c.b16 %v670, %v670
        %vm691 = vcmask 326656
        %v693 = vsel %vm691, %v386, 0
        %vm695 = vcmask 1043456
        %v697 = vsel %vm695, %v679, 0
        %v700 = vsel %vm695, %v680, 0
        %v703 = vsel %vm695, %v681, 0
        %v706 = vsel %vm695, %v682, 0
        %708 = vmatprep.subr.bf16.mxu0 %v672
        %709 = vmatpush1.bf16.msra.mxu0 %v671
        %710 = vmatprep.subr.bf16.mxu0 %v676
        %711 = vmatpush1.bf16.msra.mxu0 %v675
        %712 = vmatprep.subr.bf16.mxu0 %v700
        %713 = vmatpush1.bf16.msra.mxu0 %v697
        %714 = vmatprep.subr.bf16.mxu0 0
        %715 = vmatpush1.bf16.msra.mxu0 0
        %716 = vmatprep.subr.bf16.mxu0 0
        %717 = vmatpush1.bf16.msra.mxu0 0
        %718 = vmatprep.subr.bf16.mxu0 0
        %719 = vmatpush1.bf16.msra.mxu0 0
        %720 = vmatprep.subr.bf16.mxu0 0
        %721 = vmatpush1.bf16.msra.mxu0 0
        %722 = vmatprep.subr.bf16.mxu0 0
        %723 = vmatpush1.bf16.msra.mxu0 0
        %724 = vmatprep.subr.bf16.mxu0 0
        %725 = vmatpush1.bf16.msra.mxu0 0
        %726 = vmatprep.subr.bf16.mxu0 0
        %727 = vmatpush1.bf16.msra.mxu0 0
        %728 = vmatprep.subr.bf16.mxu0 0
        %729 = vmatpush1.bf16.msra.mxu0 0
        %730 = vmatprep.subr.bf16.mxu0 0
        %731 = vmatpush1.bf16.msra.mxu0 0
        %732 = vmatprep.subr.bf16.mxu0 0
        %733 = vmatpush1.bf16.msra.mxu0 0
        %734 = vmatprep.subr.bf16.mxu0 0
        %735 = vmatpush1.bf16.msra.mxu0 0
        %736 = vmatprep.subr.bf16.mxu0 0
        %737 = vmatpush1.bf16.msra.mxu0 0
        %738 = vmatprep.subr.bf16.mxu0 0
        %739 = vmatpush1.bf16.msra.mxu0 0
        %740 = vmatprep.mubr.bf16.mxu0 0
        %741 = vmatmul.mubr.bf16.gmra.mrb[0].mxu0 %v693
        %v742 = vpop.f32.mrb[0].mxu0
        %v743 = vadd.f32 0.0, %v742
        %v744 = vpop.f32.mrb[0].mxu0
        %v745 = vadd.f32 0.0, %v744
        %v746 = vpop.f32.mrb[0].mxu0
        %v747 = vpop.f32.mrb[0].mxu0
        %748 = vdwg.mxu0
        %749 = vmatprep.subr.bf16.mxu0 %v674
        %750 = vmatpush1.bf16.msra.mxu0 %v673
        %751 = vmatprep.subr.bf16.mxu0 %v678
        %752 = vmatpush1.bf16.msra.mxu0 %v677
        %753 = vmatprep.subr.bf16.mxu0 %v706
        %754 = vmatpush1.bf16.msra.mxu0 %v703
        %755 = vmatprep.subr.bf16.mxu0 0
        %756 = vmatpush1.bf16.msra.mxu0 0
        %757 = vmatprep.subr.bf16.mxu0 0
        %758 = vmatpush1.bf16.msra.mxu0 0
        %759 = vmatprep.subr.bf16.mxu0 0
        %760 = vmatpush1.bf16.msra.mxu0 0
        %761 = vmatprep.subr.bf16.mxu0 0
        %762 = vmatpush1.bf16.msra.mxu0 0
        %763 = vmatprep.subr.bf16.mxu0 0
        %764 = vmatpush1.bf16.msra.mxu0 0
        %765 = vmatprep.subr.bf16.mxu0 0
        %766 = vmatpush1.bf16.msra.mxu0 0
        %767 = vmatprep.subr.bf16.mxu0 0
        %768 = vmatpush1.bf16.msra.mxu0 0
        %769 = vmatprep.subr.bf16.mxu0 0
        %770 = vmatpush1.bf16.msra.mxu0 0
        %771 = vmatprep.subr.bf16.mxu0 0
        %772 = vmatpush1.bf16.msra.mxu0 0
        %773 = vmatprep.subr.bf16.mxu0 0
        %774 = vmatpush1.bf16.msra.mxu0 0
        %775 = vmatprep.subr.bf16.mxu0 0
        %776 = vmatpush1.bf16.msra.mxu0 0
        %777 = vmatprep.subr.bf16.mxu0 0
        %778 = vmatpush1.bf16.msra.mxu0 0
        %779 = vmatprep.subr.bf16.mxu0 0
        %780 = vmatpush1.bf16.msra.mxu0 0
        %781 = vmatprep.mubr.bf16.mxu0 0
        %782 = vmatmul.mubr.bf16.gmra.mrb[0].mxu0 %v693
        %v783 = vpop.f32.mrb[0].mxu0
        %v784 = vadd.f32 0.0, %v783
        %v785 = vpop.f32.mrb[0].mxu0
        %v786 = vadd.f32 0.0, %v785
        %v787 = vpop.f32.mrb[0].mxu0
        %v788 = vpop.f32.mrb[0].mxu0
        %789 = vdwg.mxu0
        %v800 = vunpack.c.l.b16 %v376
        %v801 = vunpack.c.h.b16 %v376
        %v802 = vunpack.c.l.b16 %v377
        %v803 = vunpack.c.h.b16 %v377
        %v804 = vunpack.c.l.b16 %v378
        %v805 = vunpack.c.h.b16 %v378
        %v806 = vunpack.c.l.b16 %v379
        %v807 = vunpack.c.h.b16 %v379
        %v808 = vunpack.c.l.b16 %v380
        %v809 = vunpack.c.h.b16 %v380
        %v810 = vunpack.c.l.b16 %v381
        %v811 = vunpack.c.h.b16 %v381
        %v812 = vunpack.c.l.b16 %v382
        %v813 = vunpack.c.h.b16 %v382
        %v814 = vunpack.c.l.b16 %v383
        %v815 = vunpack.c.h.b16 %v383
        %v816 = vunpack.c.l.b16 %v384
        %v817 = vunpack.c.h.b16 %v384
        %v818 = vunpack.c.l.b16 %v385
        %v819 = vunpack.c.h.b16 %v385
        %v820 = vpack.c.b16 %v804, %v800
        %v821 = vpack.c.b16 %v805, %v801
        %v822 = vpack.c.b16 %v806, %v802
        %v823 = vpack.c.b16 %v807, %v803
        %v824 = vpack.c.b16 %v812, %v808
        %v825 = vpack.c.b16 %v813, %v809
        %v826 = vpack.c.b16 %v814, %v810
        %v827 = vpack.c.b16 %v815, %v811
        %v828 = vpack.c.b16 %v816, %v816
        %v829 = vpack.c.b16 %v817, %v817
        %v830 = vpack.c.b16 %v818, %v818
        %v831 = vpack.c.b16 %v819, %v819
        %v841 = vsel %vm695, %v828, 0
        %v844 = vsel %vm695, %v829, 0
        %v847 = vsel %vm695, %v830, 0
        %v850 = vsel %vm695, %v831, 0
        %852 = vmatprep.subr.bf16.mxu0 %v821
        %853 = vmatpush1.bf16.msra.mxu0 %v820
        %854 = vmatprep.subr.bf16.mxu0 %v825
        %855 = vmatpush1.bf16.msra.mxu0 %v824
        %856 = vmatprep.subr.bf16.mxu0 %v844
        %857 = vmatpush1.bf16.msra.mxu0 %v841
        %858 = vmatprep.subr.bf16.mxu0 0
        %859 = vmatpush1.bf16.msra.mxu0 0
        %860 = vmatprep.subr.bf16.mxu0 0
        %861 = vmatpush1.bf16.msra.mxu0 0
        %862 = vmatprep.subr.bf16.mxu0 0
        %863 = vmatpush1.bf16.msra.mxu0 0
        %864 = vmatprep.subr.bf16.mxu0 0
        %865 = vmatpush1.bf16.msra.mxu0 0
        %866 = vmatprep.subr.bf16.mxu0 0
        %867 = vmatpush1.bf16.msra.mxu0 0
        %868 = vmatprep.subr.bf16.mxu0 0
        %869 = vmatpush1.bf16.msra.mxu0 0
        %870 = vmatprep.subr.bf16.mxu0 0
        %871 = vmatpush1.bf16.msra.mxu0 0
        %872 = vmatprep.subr.bf16.mxu0 0
        %873 = vmatpush1.bf16.msra.mxu0 0
        %874 = vmatprep.subr.bf16.mxu0 0
        %875 = vmatpush1.bf16.msra.mxu0 0
        %876 = vmatprep.subr.bf16.mxu0 0
        %877 = vmatpush1.bf16.msra.mxu0 0
        %878 = vmatprep.subr.bf16.mxu0 0
        %879 = vmatpush1.bf16.msra.mxu0 0
        %880 = vmatprep.subr.bf16.mxu0 0
        %881 = vmatpush1.bf16.msra.mxu0 0
        %882 = vmatprep.subr.bf16.mxu0 0
        %883 = vmatpush1.bf16.msra.mxu0 0
        %884 = vmatprep.mubr.bf16.mxu0 0
        %885 = vmatmul.mubr.bf16.gmra.mrb[0].mxu0 %v693
        %v886 = vpop.f32.mrb[0].mxu0
        %v887 = vadd.f32 0.0, %v886
        %v888 = vpop.f32.mrb[0].mxu0
        %v889 = vadd.f32 0.0, %v888
        %v890 = vpop.f32.mrb[0].mxu0
        %v891 = vpop.f32.mrb[0].mxu0
        %892 = vdwg.mxu0
        %893 = vmatprep.subr.bf16.mxu0 %v823
        %894 = vmatpush1.bf16.msra.mxu0 %v822
        %895 = vmatprep.subr.bf16.mxu0 %v827
        %896 = vmatpush1.bf16.msra.mxu0 %v826
        %897 = vmatprep.subr.bf16.mxu0 %v850
        %898 = vmatpush1.bf16.msra.mxu0 %v847
        %899 = vmatprep.subr.bf16.mxu0 0
        %900 = vmatpush1.bf16.msra.mxu0 0
        %901 = vmatprep.subr.bf16.mxu0 0
        %902 = vmatpush1.bf16.msra.mxu0 0
        %903 = vmatprep.subr.bf16.mxu0 0
        %904 = vmatpush1.bf16.msra.mxu0 0
        %905 = vmatprep.subr.bf16.mxu0 0
        %906 = vmatpush1.bf16.msra.mxu0 0
        %907 = vmatprep.subr.bf16.mxu0 0
        %908 = vmatpush1.bf16.msra.mxu0 0
        %909 = vmatprep.subr.bf16.mxu0 0
        %910 = vmatpush1.bf16.msra.mxu0 0
        %911 = vmatprep.subr.bf16.mxu0 0
        %912 = vmatpush1.bf16.msra.mxu0 0
        %913 = vmatprep.subr.bf16.mxu0 0
        %914 = vmatpush1.bf16.msra.mxu0 0
        %915 = vmatprep.subr.bf16.mxu0 0
        %916 = vmatpush1.bf16.msra.mxu0 0
        %917 = vmatprep.subr.bf16.mxu0 0
        %918 = vmatpush1.bf16.msra.mxu0 0
        %919 = vmatprep.subr.bf16.mxu0 0
        %920 = vmatpush1.bf16.msra.mxu0 0
        %921 = vmatprep.subr.bf16.mxu0 0
        %922 = vmatpush1.bf16.msra.mxu0 0
        %923 = vmatprep.subr.bf16.mxu0 0
        %924 = vmatpush1.bf16.msra.mxu0 0
        %925 = vmatprep.mubr.bf16.mxu0 0
        %926 = vmatmul.mubr.bf16.gmra.mrb[0].mxu0 %v693
        %v927 = vpop.f32.mrb[0].mxu0
        %v928 = vadd.f32 0.0, %v927
        %v929 = vpop.f32.mrb[0].mxu0
        %v930 = vadd.f32 0.0, %v929
        %v931 = vpop.f32.mrb[0].mxu0
        %v932 = vpop.f32.mrb[0].mxu0
        %933 = vdwg.mxu0
        %935 = vset.pattern.permute.xlu0 0
        %936 = vperm.xlu0 %935, %v387
        %v937 = vpop.permute.xlu0 %936
        %v940 = vsel %vm695, %v637, 0
        %v943 = vsel %vm695, %v638, 0
        %v946 = vsel %vm695, %v639, 0
        %v949 = vsel %vm695, %v640, 0
        %951 = vmatprep.subr.bf16.mxu0 %v630
        %952 = vmatpush1.bf16.msra.mxu0 %v629
        %953 = vmatprep.subr.bf16.mxu0 %v634
        %954 = vmatpush1.bf16.msra.mxu0 %v633
        %955 = vmatprep.subr.bf16.mxu0 %v943
        %956 = vmatpush1.bf16.msra.mxu0 %v940
        %957 = vmatprep.subr.bf16.mxu0 0
        %958 = vmatpush1.bf16.msra.mxu0 0
        %959 = vmatprep.subr.bf16.mxu0 0
        %960 = vmatpush1.bf16.msra.mxu0 0
        %961 = vmatprep.subr.bf16.mxu0 0
        %962 = vmatpush1.bf16.msra.mxu0 0
        %963 = vmatprep.subr.bf16.mxu0 0
        %964 = vmatpush1.bf16.msra.mxu0 0
        %965 = vmatprep.subr.bf16.mxu0 0
        %966 = vmatpush1.bf16.msra.mxu0 0
        %967 = vmatprep.subr.bf16.mxu0 0
        %968 = vmatpush1.bf16.msra.mxu0 0
        %969 = vmatprep.subr.bf16.mxu0 0
        %970 = vmatpush1.bf16.msra.mxu0 0
        %971 = vmatprep.subr.bf16.mxu0 0
        %972 = vmatpush1.bf16.msra.mxu0 0
        %973 = vmatprep.subr.bf16.mxu0 0
        %974 = vmatpush1.bf16.msra.mxu0 0
        %975 = vmatprep.subr.bf16.mxu0 0
        %976 = vmatpush1.bf16.msra.mxu0 0
        %977 = vmatprep.subr.bf16.mxu0 0
        %978 = vmatpush1.bf16.msra.mxu0 0
        %979 = vmatprep.subr.bf16.mxu0 0
        %980 = vmatpush1.bf16.msra.mxu0 0
        %981 = vmatprep.subr.bf16.mxu0 0
        %982 = vmatpush1.bf16.msra.mxu0 0
        %983 = vmatprep.mubr.bf16.mxu0 0
        %984 = vmatmul.mubr.bf16.gmra.mrb[0].mxu0 %v693
        %v985 = vpop.f32.mrb[0].mxu0
        %v986 = vadd.f32 %v937, %v985
        %v987 = vpop.f32.mrb[0].mxu0
        %v988 = vadd.f32 %v937, %v987
        %v989 = vpop.f32.mrb[0].mxu0
        %v990 = vpop.f32.mrb[0].mxu0
        %991 = vdwg.mxu0
        %992 = vmatprep.subr.bf16.mxu0 %v632
        %993 = vmatpush1.bf16.msra.mxu0 %v631
        %994 = vmatprep.subr.bf16.mxu0 %v636
        %995 = vmatpush1.bf16.msra.mxu0 %v635
        %996 = vmatprep.subr.bf16.mxu0 %v949
        %997 = vmatpush1.bf16.msra.mxu0 %v946
        %998 = vmatprep.subr.bf16.mxu0 0
        %999 = vmatpush1.bf16.msra.mxu0 0
        %1000 = vmatprep.subr.bf16.mxu0 0
        %1001 = vmatpush1.bf16.msra.mxu0 0
        %1002 = vmatprep.subr.bf16.mxu0 0
        %1003 = vmatpush1.bf16.msra.mxu0 0
        %1004 = vmatprep.subr.bf16.mxu0 0
        %1005 = vmatpush1.bf16.msra.mxu0 0
        %1006 = vmatprep.subr.bf16.mxu0 0
        %1007 = vmatpush1.bf16.msra.mxu0 0
        %1008 = vmatprep.subr.bf16.mxu0 0
        %1009 = vmatpush1.bf16.msra.mxu0 0
        %1010 = vmatprep.subr.bf16.mxu0 0
        %1011 = vmatpush1.bf16.msra.mxu0 0
        %1012 = vmatprep.subr.bf16.mxu0 0
        %1013 = vmatpush1.bf16.msra.mxu0 0
        %1014 = vmatprep.subr.bf16.mxu0 0
        %1015 = vmatpush1.bf16.msra.mxu0 0
        %1016 = vmatprep.subr.bf16.mxu0 0
        %1017 = vmatpush1.bf16.msra.mxu0 0
        %1018 = vmatprep.subr.bf16.mxu0 0
        %1019 = vmatpush1.bf16.msra.mxu0 0
        %1020 = vmatprep.subr.bf16.mxu0 0
        %1021 = vmatpush1.bf16.msra.mxu0 0
        %1022 = vmatprep.subr.bf16.mxu0 0
        %1023 = vmatpush1.bf16.msra.mxu0 0
        %1024 = vmatprep.mubr.bf16.mxu0 0
        %1025 = vmatmul.mubr.bf16.gmra.mrb[0].mxu0 %v693
        %v1026 = vpop.f32.mrb[0].mxu0
        %v1027 = vadd.f32 %v937, %v1026
        %v1028 = vpop.f32.mrb[0].mxu0
        %v1029 = vadd.f32 %v937, %v1028
        %v1030 = vpop.f32.mrb[0].mxu0
        %v1031 = vpop.f32.mrb[0].mxu0
        %1032 = vdwg.mxu0
        %v1033 = vmul.f32 %v743, %v743
        %v1034 = vmul.f32 %v745, %v745
        %v1035 = vmul.f32 %v784, %v784
        %v1036 = vmul.f32 %v786, %v786
        %v1037 = vmul.f32 %v887, %v887
        %v1038 = vmul.f32 %v889, %v889
        %v1039 = vmul.f32 %v928, %v928
        %v1040 = vmul.f32 %v930, %v930
        %v1041 = vadd.f32 %v1033, %v1037
        %v1042 = vadd.f32 %v1034, %v1038
        %v1043 = vadd.f32 %v1035, %v1039
        %v1044 = vadd.f32 %v1036, %v1040
        %v1045 = vrsqrt.pop %v1041
        %v1046 = vmul.f32 %v1041, %v1045
        %vm1047 = vcmp.eq.f32.partialorder %v1041, inf
        %v1048 = vsel %vm1047, %v1041, %v1046
        %vm1049 = vcmp.eq.f32.partialorder %v1041, 0.0
        %v1050 = vand.u32 %v1041, 2147483648
        %v1051 = vsel %vm1049, %v1050, %v1048
        %v1052 = vrsqrt.pop %v1042
        %v1053 = vmul.f32 %v1042, %v1052
        %vm1054 = vcmp.eq.f32.partialorder %v1042, inf
        %v1055 = vsel %vm1054, %v1042, %v1053
        %vm1056 = vcmp.eq.f32.partialorder %v1042, 0.0
        %v1057 = vand.u32 %v1042, 2147483648
        %v1058 = vsel %vm1056, %v1057, %v1055
        %v1059 = vrsqrt.pop %v1043
        %v1060 = vmul.f32 %v1043, %v1059
        %vm1061 = vcmp.eq.f32.partialorder %v1043, inf
        %v1062 = vsel %vm1061, %v1043, %v1060
        %vm1063 = vcmp.eq.f32.partialorder %v1043, 0.0
        %v1064 = vand.u32 %v1043, 2147483648
        %v1065 = vsel %vm1063, %v1064, %v1062
        %v1066 = vrsqrt.pop %v1044
        %v1067 = vmul.f32 %v1044, %v1066
        %vm1068 = vcmp.eq.f32.partialorder %v1044, inf
        %v1069 = vsel %vm1068, %v1044, %v1067
        %vm1070 = vcmp.eq.f32.partialorder %v1044, 0.0
        %v1071 = vand.u32 %v1044, 2147483648
        %v1072 = vsel %vm1070, %v1071, %v1069
        %v1073 = vadd.f32 %v1051, %v937
        %v1074 = vadd.f32 %v1058, %v937
        %v1075 = vadd.f32 %v1065, %v937
        %v1076 = vadd.f32 %v1072, %v937
        %v1077 = vand.u32 2147483647, %v887
        %v1078 = vand.u32 2147483647, %v889
        %v1079 = vand.u32 2147483647, %v928
        %v1080 = vand.u32 2147483647, %v930
        %vm1081 = vcmp.lt.f32.partialorder %v1077, 1e-08
        %vm1082 = vcmp.lt.f32.partialorder %v1078, 1e-08
        %vm1083 = vcmp.lt.f32.partialorder %v1079, 1e-08
        %vm1084 = vcmp.lt.f32.partialorder %v1080, 1e-08
        %v1085 = vsel %vm1081, 1e-08, %v887
        %v1086 = vsel %vm1082, 1e-08, %v889
        %v1087 = vsel %vm1083, 1e-08, %v928
        %v1088 = vsel %vm1084, 1e-08, %v930
        %v1089 = vand.u32 2147483647, %v743
        %v1090 = vand.u32 2147483647, %v1085
        %v1091 = vmin.f32 %v1089, %v1090
        %v1092 = vmax.f32 %v1089, %v1090
        %v1093 = vrcp.pop %v1092
        %v1094 = vmul.f32 %v1091, %v1093
        %v1095 = vmul.f32 %v1094, %v1094
        %v1096 = vmul.f32 0.002785687, %v1095
        %v1097 = vadd.f32 %v1096, -0.015866
        %v1098 = vmul.f32 %v1097, %v1095
        %v1099 = vadd.f32 %v1098, 0.04247222
        %v1100 = vmul.f32 %v1099, %v1095
        %v1101 = vadd.f32 %v1100, -0.074975304
        %v1102 = vmul.f32 %v1101, %v1095
        %v1103 = vadd.f32 %v1102, 0.1064488
        %v1104 = vmul.f32 %v1103, %v1095
        %v1105 = vadd.f32 %v1104, -0.14207031
        %v1106 = vmul.f32 %v1105, %v1095
        %v1107 = vadd.f32 %v1106, 0.19993454
        %v1108 = vmul.f32 %v1107, %v1095
        %v1109 = vadd.f32 %v1108, -0.33333147
        %v1110 = vmul.f32 %v1109, %v1095
        %v1111 = vmul.f32 %v1110, %v1094
        %v1112 = vadd.f32 %v1111, %v1094
        %vm1113 = vcmp.gt.f32.partialorder %v1090, %v1089
        %v1114 = vsub.f32 1.5707964, %v1112
        %v1115 = vsel %vm1113, %v1114, %v1112
        %vm1116 = vcmp.lt.f32.partialorder %v743, 0.0
        %v1117 = vsub.f32 3.1415927, %v1115
        %v1118 = vsel %vm1116, %v1117, %v1115
        %vm1119 = vcmp.lt.s32.totalorder %v743, 0
        %v1120 = vsel %vm1119, 3.1415927, 0.0
        %vm1121 = vcmp.eq.f32.partialorder %v1085, 0.0
        %v1122 = vsel %vm1121, %v1120, %v1118
        %vm1123 = vcmp.ne.f32.partialorder %v743, %v743
        %vm1124 = vcmp.ne.f32.partialorder %v1085, %v1085
        %vm1125 = vmor %vm1123, %vm1124
        %v1126 = vsel %vm1125, nan, %v1122
        %vm1127 = vcmp.lt.f32.partialorder %v743, 0.0
        %v1128 = vsel %vm1127, 2.3561945, 0.7853982
        %vm1129 = vcmp.eq.s32.totalorder %v1089, inf
        %vm1130 = vcmp.eq.s32.totalorder %v1090, inf
        %vm1131 = vmand %vm1129, %vm1130
        %v1132 = vsel %vm1131, %v1128, %v1126
        %v1133 = vand.u32 2147483647, %v1132
        %v1134 = vand.u32 %v1085, 2147483648
        %v1135 = vor.u32 %v1133, %v1134
        %v1136 = vand.u32 2147483647, %v745
        %v1137 = vand.u32 2147483647, %v1086
        %v1138 = vmin.f32 %v1136, %v1137
        %v1139 = vmax.f32 %v1136, %v1137
        %v1140 = vrcp.pop %v1139
        %v1141 = vmul.f32 %v1138, %v1140
        %v1142 = vmul.f32 %v1141, %v1141
        %v1143 = vmul.f32 0.002785687, %v1142
        %v1144 = vadd.f32 %v1143, -0.015866
        %v1145 = vmul.f32 %v1144, %v1142
        %v1146 = vadd.f32 %v1145, 0.04247222
        %v1147 = vmul.f32 %v1146, %v1142
        %v1148 = vadd.f32 %v1147, -0.074975304
        %v1149 = vmul.f32 %v1148, %v1142
        %v1150 = vadd.f32 %v1149, 0.1064488
        %v1151 = vmul.f32 %v1150, %v1142
        %v1152 = vadd.f32 %v1151, -0.14207031
        %v1153 = vmul.f32 %v1152, %v1142
        %v1154 = vadd.f32 %v1153, 0.19993454
        %v1155 = vmul.f32 %v1154, %v1142
        %v1156 = vadd.f32 %v1155, -0.33333147
        %v1157 = vmul.f32 %v1156, %v1142
        %v1158 = vmul.f32 %v1157, %v1141
        %v1159 = vadd.f32 %v1158, %v1141
        %vm1160 = vcmp.gt.f32.partialorder %v1137, %v1136
        %v1161 = vsub.f32 1.5707964, %v1159
        %v1162 = vsel %vm1160, %v1161, %v1159
        %vm1163 = vcmp.lt.f32.partialorder %v745, 0.0
        %v1164 = vsub.f32 3.1415927, %v1162
        %v1165 = vsel %vm1163, %v1164, %v1162
        %vm1166 = vcmp.lt.s32.totalorder %v745, 0
        %v1167 = vsel %vm1166, 3.1415927, 0.0
        %vm1168 = vcmp.eq.f32.partialorder %v1086, 0.0
        %v1169 = vsel %vm1168, %v1167, %v1165
        %vm1170 = vcmp.ne.f32.partialorder %v745, %v745
        %vm1171 = vcmp.ne.f32.partialorder %v1086, %v1086
        %vm1172 = vmor %vm1170, %vm1171
        %v1173 = vsel %vm1172, nan, %v1169
        %vm1174 = vcmp.lt.f32.partialorder %v745, 0.0
        %v1175 = vsel %vm1174, 2.3561945, 0.7853982
        %vm1176 = vcmp.eq.s32.totalorder %v1136, inf
        %vm1177 = vcmp.eq.s32.totalorder %v1137, inf
        %vm1178 = vmand %vm1176, %vm1177
        %v1179 = vsel %vm1178, %v1175, %v1173
        %v1180 = vand.u32 2147483647, %v1179
        %v1181 = vand.u32 %v1086, 2147483648
        %v1182 = vor.u32 %v1180, %v1181
        %v1183 = vand.u32 2147483647, %v784
        %v1184 = vand.u32 2147483647, %v1087
        %v1185 = vmin.f32 %v1183, %v1184
        %v1186 = vmax.f32 %v1183, %v1184
        %v1187 = vrcp.pop %v1186
        %v1188 = vmul.f32 %v1185, %v1187
        %v1189 = vmul.f32 %v1188, %v1188
        %v1190 = vmul.f32 0.002785687, %v1189
        %v1191 = vadd.f32 %v1190, -0.015866
        %v1192 = vmul.f32 %v1191, %v1189
        %v1193 = vadd.f32 %v1192, 0.04247222
        %v1194 = vmul.f32 %v1193, %v1189
        %v1195 = vadd.f32 %v1194, -0.074975304
        %v1196 = vmul.f32 %v1195, %v1189
        %v1197 = vadd.f32 %v1196, 0.1064488
        %v1198 = vmul.f32 %v1197, %v1189
        %v1199 = vadd.f32 %v1198, -0.14207031
        %v1200 = vmul.f32 %v1199, %v1189
        %v1201 = vadd.f32 %v1200, 0.19993454
        %v1202 = vmul.f32 %v1201, %v1189
        %v1203 = vadd.f32 %v1202, -0.33333147
        %v1204 = vmul.f32 %v1203, %v1189
        %v1205 = vmul.f32 %v1204, %v1188
        %v1206 = vadd.f32 %v1205, %v1188
        %vm1207 = vcmp.gt.f32.partialorder %v1184, %v1183
        %v1208 = vsub.f32 1.5707964, %v1206
        %v1209 = vsel %vm1207, %v1208, %v1206
        %vm1210 = vcmp.lt.f32.partialorder %v784, 0.0
        %v1211 = vsub.f32 3.1415927, %v1209
        %v1212 = vsel %vm1210, %v1211, %v1209
        %vm1213 = vcmp.lt.s32.totalorder %v784, 0
        %v1214 = vsel %vm1213, 3.1415927, 0.0
        %vm1215 = vcmp.eq.f32.partialorder %v1087, 0.0
        %v1216 = vsel %vm1215, %v1214, %v1212
        %vm1217 = vcmp.ne.f32.partialorder %v784, %v784
        %vm1218 = vcmp.ne.f32.partialorder %v1087, %v1087
        %vm1219 = vmor %vm1217, %vm1218
        %v1220 = vsel %vm1219, nan, %v1216
        %vm1221 = vcmp.lt.f32.partialorder %v784, 0.0
        %v1222 = vsel %vm1221, 2.3561945, 0.7853982
        %vm1223 = vcmp.eq.s32.totalorder %v1183, inf
        %vm1224 = vcmp.eq.s32.totalorder %v1184, inf
        %vm1225 = vmand %vm1223, %vm1224
        %v1226 = vsel %vm1225, %v1222, %v1220
        %v1227 = vand.u32 2147483647, %v1226
        %v1228 = vand.u32 %v1087, 2147483648
        %v1229 = vor.u32 %v1227, %v1228
        %v1230 = vand.u32 2147483647, %v786
        %v1231 = vand.u32 2147483647, %v1088
        %v1232 = vmin.f32 %v1230, %v1231
        %v1233 = vmax.f32 %v1230, %v1231
        %v1234 = vrcp.pop %v1233
        %v1235 = vmul.f32 %v1232, %v1234
        %v1236 = vmul.f32 %v1235, %v1235
        %v1237 = vmul.f32 0.002785687, %v1236
        %v1238 = vadd.f32 %v1237, -0.015866
        %v1239 = vmul.f32 %v1238, %v1236
        %v1240 = vadd.f32 %v1239, 0.04247222
        %v1241 = vmul.f32 %v1240, %v1236
        %v1242 = vadd.f32 %v1241, -0.074975304
        %v1243 = vmul.f32 %v1242, %v1236
        %v1244 = vadd.f32 %v1243, 0.1064488
        %v1245 = vmul.f32 %v1244, %v1236
        %v1246 = vadd.f32 %v1245, -0.14207031
        %v1247 = vmul.f32 %v1246, %v1236
        %v1248 = vadd.f32 %v1247, 0.19993454
        %v1249 = vmul.f32 %v1248, %v1236
        %v1250 = vadd.f32 %v1249, -0.33333147
        %v1251 = vmul.f32 %v1250, %v1236
        %v1252 = vmul.f32 %v1251, %v1235
        %v1253 = vadd.f32 %v1252, %v1235
        %vm1254 = vcmp.gt.f32.partialorder %v1231, %v1230
        %v1255 = vsub.f32 1.5707964, %v1253
        %v1256 = vsel %vm1254, %v1255, %v1253
        %vm1257 = vcmp.lt.f32.partialorder %v786, 0.0
        %v1258 = vsub.f32 3.1415927, %v1256
        %v1259 = vsel %vm1257, %v1258, %v1256
        %vm1260 = vcmp.lt.s32.totalorder %v786, 0
        %v1261 = vsel %vm1260, 3.1415927, 0.0
        %vm1262 = vcmp.eq.f32.partialorder %v1088, 0.0
        %v1263 = vsel %vm1262, %v1261, %v1259
        %vm1264 = vcmp.ne.f32.partialorder %v786, %v786
        %vm1265 = vcmp.ne.f32.partialorder %v1088, %v1088
        %vm1266 = vmor %vm1264, %vm1265
        %v1267 = vsel %vm1266, nan, %v1263
        %vm1268 = vcmp.lt.f32.partialorder %v786, 0.0
        %v1269 = vsel %vm1268, 2.3561945, 0.7853982
        %vm1270 = vcmp.eq.s32.totalorder %v1230, inf
        %vm1271 = vcmp.eq.s32.totalorder %v1231, inf
        %vm1272 = vmand %vm1270, %vm1271
        %v1273 = vsel %vm1272, %v1269, %v1267
        %v1274 = vand.u32 2147483647, %v1273
        %v1275 = vand.u32 %v1088, 2147483648
        %v1276 = vor.u32 %v1274, %v1275
        %1278 = vset.pattern.permute.xlu0 0
        %1279 = vperm.xlu0 %1278, %v388
        %v1280 = vpop.permute.xlu0 %1279
        %v1282 = vadd.f32 %v1135, %v1280
        %v1283 = vadd.f32 %v1182, %v1280
        %v1284 = vadd.f32 %v1229, %v1280
        %v1285 = vadd.f32 %v1276, %v1280
        %v1286 = vmul.f32 %v1073, 0.5
        %v1287 = vmul.f32 %v1074, 0.5
        %v1288 = vmul.f32 %v1075, 0.5
        %v1289 = vmul.f32 %v1076, 0.5
        %v1290 = vmul.f32 %v986, 0.5
        %v1291 = vmul.f32 %v988, 0.5
        %v1292 = vmul.f32 %v1027, 0.5
        %v1293 = vmul.f32 %v1029, 0.5
        %v1294 = vadd.f32 %v1286, %v1290
        %v1295 = vadd.f32 %v1287, %v1291
        %v1296 = vadd.f32 %v1288, %v1292
        %v1297 = vadd.f32 %v1289, %v1293
        %1298 = vst [vmem:[%s357] sm:$0xff] %v1294
        %1299 = vst [vmem:[%s357 + $0x8] sm:$0xff] %v1295
        %1300 = vst [vmem:[%s357 + $0x10] sm:$0xff] %v1296
        %1301 = vst [vmem:[%s357 + $0x18] sm:$0xff] %v1297
        %1302 = vst [vmem:[%s363] sm:$0xff] %v1282
        %1303 = vst [vmem:[%s363 + $0x8] sm:$0xff] %v1283
        %1304 = vst [vmem:[%s363 + $0x10] sm:$0xff] %v1284
        %1305 = vst [vmem:[%s363 + $0x18] sm:$0xff] %v1285
        %s1306 = smul.u32 4, %s18
        %p1307 = scmp.lt.s32.totalorder %s1306, 15
        %s1308 = scalar_select %p1307, %s1306, 15
        %s1309 = smul.addr %s1308, 8
        %s1310 = scalar_lea.vmem %s5, %s1309
        %s1311 = smul.u32 4, %s18
        %p1312 = scmp.lt.s32.totalorder %s1311, 15
        %s1313 = scalar_select %p1312, %s1311, 15
        %s1314 = smul.addr %s1313, 8
        %s1315 = scalar_lea.vmem %s6, %s1314
        // Predicated region
        $region87: #{complex_conv_transpose2d.1} parent=77 // pred_check
          %p1316 = pneg %p151
        $region88: #{complex_conv_transpose2d.1} parent=77 // pred_check_branch
          %1318 = sbr.rel (%p1316) target = $region90
        $region89: #{complex_conv_transpose2d.1} parent=77 // pred_region
          %s1319 = smul.u32 4, %s18
        $region90: #{complex_conv_transpose2d.1} parent=77 // pred_fallthru
          _
        // Predicated region
        $region91: #{complex_conv_transpose2d.1} parent=77 // pred_check
          %p1320 = pneg %p177
        $region92: #{complex_conv_transpose2d.1} parent=77 // pred_check_branch
          %1322 = sbr.rel (%p1320) target = $region94
        $region93: #{complex_conv_transpose2d.1} parent=77 // pred_region
          %s1323 = smul.u32 4, %s18
        $region94: #{complex_conv_transpose2d.1} parent=77 // pred_fallthru
          _
      $region78: #{complex_conv_transpose2d.1} parent=5 // pred_fallthru
        _
      %p1324 = scmp.le.s32.totalorder 2, %s13
      // Predicated region
      $region95: #{complex_conv_transpose2d.1} parent=5 // pred_check
        %p1325 = pneg %p1324
      $region96: #{complex_conv_transpose2d.1} parent=5 // pred_check_branch
        %1327 = sbr.rel (%p1325) target = $region98
      $region97: #{complex_conv_transpose2d.1} parent=5 // pred_region
        %s1328 = ssub.s32 %s13, 2
        // Predicated region
        $region99: #{complex_conv_transpose2d.1} parent=97 // pred_check
          %p1329 = pneg %p157
        $region100: #{complex_conv_transpose2d.1} parent=97 // pred_check_branch
          %1331 = sbr.rel (%p1329) target = $region102
        $region101: #{complex_conv_transpose2d.1} parent=97 // pred_region
          %s1332 = smul.u32 4, %s19
          %p1333 = scmp.lt.s32.totalorder %s1332, 15
          %s1334 = scalar_select %p1333, %s1332, 15
          %s1335 = smul.addr %s1334, 8
          %s1336 = scalar_lea.vmem %s5, %s1335
        $region102: #{complex_conv_transpose2d.1} parent=97 // pred_fallthru
          _
        // Predicated region
        $region103: #{complex_conv_transpose2d.1} parent=97 // pred_check
          %p1337 = pneg %p183
        $region104: #{complex_conv_transpose2d.1} parent=97 // pred_check_branch
          %1339 = sbr.rel (%p1337) target = $region106
        $region105: #{complex_conv_transpose2d.1} parent=97 // pred_region
          %s1340 = smul.u32 4, %s19
          %p1341 = scmp.lt.s32.totalorder %s1340, 15
          %s1342 = scalar_select %p1341, %s1340, 15
          %s1343 = smul.addr %s1342, 8
          %s1344 = scalar_lea.vmem %s6, %s1343
        $region106: #{complex_conv_transpose2d.1} parent=97 // pred_fallthru
          _
      $region98: #{complex_conv_transpose2d.1} parent=5 // pred_fallthru
        _
    $region6: #{complex_conv_transpose2d.1} parent=1 // loop_footer
      %s17 = sadd.s32 1, %s13
    $region7: #{complex_conv_transpose2d.1} parent=1 // loop_footer_branch
      %12 = sbr.rel target = $region3
    $region8: #{complex_conv_transpose2d.1} parent=1 // loop_exit
      _

</llo_original>
